<compile_context>
chip_gen: v7x
topology: tpu7x:2x2x1
jax: 0.10.0
libtpu: 0.0.40
codegen_flags: <defaults>
</compile_context>

<pallas_src>
import jax
import jax.numpy as jnp
from jax.experimental import pallas as pl
from jax.experimental.pallas import tpu as pltpu

FEAT = 224      # fixed by nn.Linear(224, 224)
KPAD = 256      # intermediate / second-matmul contraction dim, lane multiple
TM_CAP = 512    # max rows per grid step (bounds VMEM, esp. on v7x)


def _round_up(x, m):
    return ((x + m - 1) // m) * m


def _num_tensorcores():
    # 2 TensorCores per chip on v7x; 1 on v5e/v6e (and on non-TPU backends).
    try:
        kind = jax.devices()[0].device_kind.lower()
        return 2 if "v7" in kind else 1
    except Exception:
        return 1


_NUM_TC = _num_tensorcores()


def _mlp2_kernel(x_ref, w1_ref, b1_ref, w2_ref, b2_ref, o_ref, v1_ref):
    # fc1: x (tm, 224) f32 -> bf16 cast on the VPU (hidden under the MXU),
    # canonical [M,K]@[K,N] against the pre-transposed weight; f32 accumulate.
    x_bf = x_ref[...].astype(jnp.bfloat16)
    v1 = jnp.dot(x_bf, w1_ref[...], preferred_element_type=jnp.float32)
    v1 = v1 + b1_ref[...]
    # Stage the (tm, 256) intermediate in VMEM as bf16: clean producer/consumer
    # boundary between the two MXU passes, half the traffic of an f32 spill.
    v1_ref[...] = v1.astype(v1_ref.dtype)
    # fc2: padded columns 224..255 of v1 hit zero rows of W2 -> math is exact.
    # W2 is padded only on its "in" axis, so the result is already 224 wide.
    v2 = jnp.dot(v1_ref[...], w2_ref[...], preferred_element_type=jnp.float32)
    o_ref[...] = (v2 + b2_ref[...]).astype(o_ref.dtype)


def prepare_params(w1, b1, w2, b2):
    """One-time weight prep, hoisted out of the per-call jitted path.

    PyTorch weights are (out, in). Pre-transpose to canonical [K, N] and pad:
      w1: (224_in, 224_out) -> (224, 256)  (out padded: lane-dense intermediate)
      w2: (224_in, 224_out) -> (256, 224)  (in padded to match; out stays 224)
    """
    pad = KPAD - FEAT
    w1p = jnp.pad(jnp.asarray(w1).T, ((0, 0), (0, pad))).astype(jnp.bfloat16)
    b1p = jnp.pad(jnp.asarray(b1), (0, pad)).reshape(1, KPAD).astype(jnp.float32)
    w2p = jnp.pad(jnp.asarray(w2).T, ((0, pad), (0, 0))).astype(jnp.bfloat16)
    b2p = jnp.asarray(b2).reshape(1, FEAT).astype(jnp.float32)
    return w1p, b1p, w2p, b2p


@jax.jit
def mlp2(x, w1p, b1p, w2p, b2p):
    """x: (B, S, 224) f32; (w1p, b1p, w2p, b2p) from prepare_params()."""
    B, S, F = x.shape
    assert F == FEAT
    M = B * S
    x2d = x.reshape(M, F)  # free view

    # Row tiling: at least _NUM_TC tiles (v7x's two cores each take one),
    # capped at TM_CAP rows per tile, rounded to a sublane multiple.
    tm = min(TM_CAP, _round_up((M + _NUM_TC - 1) // _NUM_TC, 8))
    m_pad = _round_up(M, tm)
    if m_pad != M:
        x2d = jnp.pad(x2d, ((0, m_pad - M), (0, 0)))
    grid = (m_pad // tm,)

    out2d = pl.pallas_call(
        _mlp2_kernel,
        out_shape=jax.ShapeDtypeStruct((m_pad, FEAT), x.dtype),
        grid_spec=pltpu.PrefetchScalarGridSpec(
            num_scalar_prefetch=0,
            grid=grid,
            in_specs=[
                pl.BlockSpec((tm, FEAT), lambda i: (i, 0)),    # x rows (f32)
                pl.BlockSpec((FEAT, KPAD), lambda i: (0, 0)),  # W1^T (resident)
                pl.BlockSpec((1, KPAD), lambda i: (0, 0)),     # b1
                pl.BlockSpec((KPAD, FEAT), lambda i: (0, 0)),  # W2^T (resident)
                pl.BlockSpec((1, FEAT), lambda i: (0, 0)),     # b2
            ],
            out_specs=pl.BlockSpec((tm, FEAT), lambda i: (i, 0)),
            scratch_shapes=[pltpu.VMEM((tm, KPAD), jnp.bfloat16)],
        ),
        compiler_params=pltpu.CompilerParams(
            dimension_semantics=("parallel",),
            vmem_limit_bytes=32 * 1024 * 1024),
    )(x2d, w1p, b1p, w2p, b2p)

    if m_pad != M:
        out2d = out2d[:M]
    return out2d.reshape(B, S, F)


def init_linear(key, out_f, in_f):
    # PyTorch default: U(-1/sqrt(in_f), 1/sqrt(in_f)) for weight and bias.
    kw, kb = jax.random.split(key)
    bound = 1.0 / (in_f ** 0.5)
    w = jax.random.uniform(kw, (out_f, in_f), jnp.float32, -bound, bound)
    b = jax.random.uniform(kb, (out_f,), jnp.float32, -bound, bound)
    return w, b


if __name__ == "__main__":
    key = jax.random.PRNGKey(0)
    kx, k1, k2 = jax.random.split(key, 3)

    B = 2  # small batch (module uses 8; feature dims fixed at 224 by Linear)
    x = jax.random.normal(kx, (B, FEAT, FEAT), jnp.float32)

    w1, b1 = init_linear(k1, FEAT, FEAT)
    w2, b2 = init_linear(k2, FEAT, FEAT)

    params = prepare_params(w1, b1, w2, b2)  # one-time weight prep
    out = mlp2(x, *params)
    out = jax.block_until_ready(out)

    # reference check in plain JAX (f32); bf16 MXU matmuls need looser tolerance
    ref = (x @ w1.T + b1) @ w2.T + b2
    assert out.shape == (B, FEAT, FEAT)
    assert jnp.allclose(out, ref, atol=5e-2, rtol=5e-2), float(
        jnp.max(jnp.abs(out - ref)))

    print("KERNEL_OK")
</pallas_src>

<mosaic_0001>
module attributes {stable_mosaic.version = 11 : i64} {
  func.func @_mlp2_kernel(%arg0: i32, %arg1: memref<448x224xf32, #tpu.memory_space<vmem>>, %arg2: memref<224x256xbf16, #tpu.memory_space<vmem>>, %arg3: memref<1x256xf32, #tpu.memory_space<vmem>>, %arg4: memref<256x224xbf16, #tpu.memory_space<vmem>>, %arg5: memref<1x224xf32, #tpu.memory_space<vmem>>, %arg6: memref<448x224xf32, #tpu.memory_space<vmem>>, %arg7: memref<448x256xbf16, #tpu.memory_space<vmem>>) attributes {dimension_semantics = [#tpu.dimension_semantics<parallel>], iteration_bounds = array<i64: 1>, scalar_prefetch = 0 : i64, scratch_operands = 1 : i64, tpu.core_type = #tpu.core_type<tc>, window_params = [{transform_indices = @transform_0, window_bounds = array<i64: 448, 224>}, {pipeline_mode = #tpu.pipeline_mode<synchronous>, transform_indices = @transform_1, window_bounds = array<i64: 224, 256>}, {pipeline_mode = #tpu.pipeline_mode<synchronous>, transform_indices = @transform_2, window_bounds = array<i64: 1, 256>}, {pipeline_mode = #tpu.pipeline_mode<synchronous>, transform_indices = @transform_3, window_bounds = array<i64: 256, 224>}, {pipeline_mode = #tpu.pipeline_mode<synchronous>, transform_indices = @transform_4, window_bounds = array<i64: 1, 224>}, {transform_indices = @transform_5, window_bounds = array<i64: 448, 224>}]} {
    %c0 = arith.constant 0 : index
    %c0_0 = arith.constant 0 : index
    %0 = vector.load %arg1[%c0, %c0_0] : memref<448x224xf32, #tpu.memory_space<vmem>>, vector<448x224xf32>
    %1 = arith.truncf %0 : vector<448x224xf32> to vector<448x224xbf16>
    %c0_1 = arith.constant 0 : index
    %c0_2 = arith.constant 0 : index
    %2 = vector.load %arg2[%c0_1, %c0_2] : memref<224x256xbf16, #tpu.memory_space<vmem>>, vector<224x256xbf16>
    %cst = arith.constant dense<0.000000e+00> : vector<448x256xf32>
    %3 = tpu.matmul %1, %2, %cst {dimension_numbers = #tpu.dot_dimension_numbers<[1], [0], [0], [1], [0, 0, 1, 1], [], []>} : vector<448x224xbf16>, vector<224x256xbf16>, vector<448x256xf32> -> vector<448x256xf32>
    %c0_3 = arith.constant 0 : index
    %c0_4 = arith.constant 0 : index
    %4 = vector.load %arg3[%c0_3, %c0_4] : memref<1x256xf32, #tpu.memory_space<vmem>>, vector<1x256xf32>
    %5 = vector.broadcast %4 : vector<1x256xf32> to vector<448x256xf32>
    %6 = arith.addf %3, %5 : vector<448x256xf32>
    %7 = arith.truncf %6 : vector<448x256xf32> to vector<448x256xbf16>
    %c0_5 = arith.constant 0 : index
    %c0_6 = arith.constant 0 : index
    %8 = vector.load %arg7[%c0_5, %c0_6] : memref<448x256xbf16, #tpu.memory_space<vmem>>, vector<448x256xbf16>
    tpu.vector_store %arg7[%c0_5, %c0_6], %7 {strides = array<i32>} : memref<448x256xbf16, #tpu.memory_space<vmem>>, vector<448x256xbf16>,
    %c0_7 = arith.constant 0 : index
    %c0_8 = arith.constant 0 : index
    %9 = vector.load %arg7[%c0_7, %c0_8] : memref<448x256xbf16, #tpu.memory_space<vmem>>, vector<448x256xbf16>
    %c0_9 = arith.constant 0 : index
    %c0_10 = arith.constant 0 : index
    %10 = vector.load %arg4[%c0_9, %c0_10] : memref<256x224xbf16, #tpu.memory_space<vmem>>, vector<256x224xbf16>
    %cst_11 = arith.constant dense<0.000000e+00> : vector<448x224xf32>
    %11 = tpu.matmul %9, %10, %cst_11 {dimension_numbers = #tpu.dot_dimension_numbers<[1], [0], [0], [1], [0, 0, 1, 1], [], []>} : vector<448x256xbf16>, vector<256x224xbf16>, vector<448x224xf32> -> vector<448x224xf32>
    %c0_12 = arith.constant 0 : index
    %c0_13 = arith.constant 0 : index
    %12 = vector.load %arg5[%c0_12, %c0_13] : memref<1x224xf32, #tpu.memory_space<vmem>>, vector<1x224xf32>
    %13 = vector.broadcast %12 : vector<1x224xf32> to vector<448x224xf32>
    %14 = arith.addf %11, %13 : vector<448x224xf32>
    %c0_14 = arith.constant 0 : index
    %c0_15 = arith.constant 0 : index
    %15 = vector.load %arg6[%c0_14, %c0_15] : memref<448x224xf32, #tpu.memory_space<vmem>>, vector<448x224xf32>
    tpu.vector_store %arg6[%c0_14, %c0_15], %14 {strides = array<i32>} : memref<448x224xf32, #tpu.memory_space<vmem>>, vector<448x224xf32>,
    return
  }
  func.func @transform_0(%arg0: i32) -> (i32, i32) {
    %c0_i32 = arith.constant 0 : i32
    %c0_i32_0 = arith.constant 0 : i32
    return %arg0, %c0_i32 : i32, i32
  }
  func.func @transform_1(%arg0: i32) -> (i32, i32) {
    %c0_i32 = arith.constant 0 : i32
    %c0_i32_0 = arith.constant 0 : i32
    %c0_i32_1 = arith.constant 0 : i32
    return %c0_i32, %c0_i32_0 : i32, i32
  }
  func.func @transform_2(%arg0: i32) -> (i32, i32) {
    %c0_i32 = arith.constant 0 : i32
    %c0_i32_0 = arith.constant 0 : i32
    %c0_i32_1 = arith.constant 0 : i32
    return %c0_i32, %c0_i32_0 : i32, i32
  }
  func.func @transform_3(%arg0: i32) -> (i32, i32) {
    %c0_i32 = arith.constant 0 : i32
    %c0_i32_0 = arith.constant 0 : i32
    %c0_i32_1 = arith.constant 0 : i32
    return %c0_i32, %c0_i32_0 : i32, i32
  }
  func.func @transform_4(%arg0: i32) -> (i32, i32) {
    %c0_i32 = arith.constant 0 : i32
    %c0_i32_0 = arith.constant 0 : i32
    %c0_i32_1 = arith.constant 0 : i32
    return %c0_i32, %c0_i32_0 : i32, i32
  }
  func.func @transform_5(%arg0: i32) -> (i32, i32) {
    %c0_i32 = arith.constant 0 : i32
    %c0_i32_0 = arith.constant 0 : i32
    return %arg0, %c0_i32 : i32, i32
  }
}

</mosaic_0001>

<llo_original>
// kernel: mlp2.1
$region0: #{mlp2.1}
  #allocation0 [shape = 'u32[]', space=smem, size = 0x4, offset = 0x4, fixed_abs, tag = 'smem constant byte address 0x4 - core index']
  #allocation1 [shape = 'u32[144,128]{1,0:T(1,128)}', space=vmem, size = 0x12000, scoped, tag = 'internal scratch']
  #allocation2 [shape = 'bf16[448,256]{1,0:T(16,128)(2,1)}', space=vmem, size = 0x38000, scoped, tag = 'scratch operand']
  %s0 = inlined_call_operand.hbm [shape: f32[448,224], index: 0, kind: input, shape index: {}]
  %s1 = inlined_call_operand.vmem [shape: bf16[224,256], index: 1, kind: input, shape index: {}]
  %s2 = inlined_call_operand.vmem [shape: f32[1,256], index: 2, kind: input, shape index: {}]
  %s3 = inlined_call_operand.vmem [shape: bf16[256,224], index: 3, kind: input, shape index: {}]
  %s4 = inlined_call_operand.vmem [shape: f32[1,224], index: 4, kind: input, shape index: {}]
  %s5 = inlined_call_operand.hbm [shape: f32[448,224], index: 5, kind: output, shape index: {}]
  %s6 = sld [smem:[#allocation0]]
  $region34: #{mlp2.1} parent=0
    _
  %s8 = ssub.s32 1, %s6
  %s9 = scalar_select 0, %s8, %s6
  $region1: #{mlp2.1} parent=0
    #allocation3 [shape = 'u8[458752]{0}', space=vmem, size = 0x70000, scoped, tag = 'input window, operand 0, single buffered']
    #allocation4 [shape = 's32[1]{0}', space=sflag, size = 0x4, scoped, tag = 'scoped memory for mlp2.1']
    #allocation5 [shape = 's32[1]{0}', space=sflag, size = 0x4, scoped, tag = 'scoped memory for mlp2.1']
    #allocation6 [shape = 'u8[458752]{0}', space=vmem, size = 0x70000, scoped, tag = 'output window, operand 0, single buffered']
    %10 = vsyncpa [#allocation4], 0
    %11 = vsyncpa [#allocation5], 0
    // Predicated region
    $region2: #{mlp2.1} parent=1 // pred_check
      _
    $region3: #{mlp2.1} parent=1 // pred_check_branch
      %13 = sbr.rel (0) target = $region5
    $region4: #{mlp2.1} parent=1 // pred_region
      %s15 = ssub.s32 14336, 14336
      %16 = vsyncadd [#allocation4], %s15
      %s17 = sshll.u32 [#allocation3], 4
      %s18 = int_to_ptr.vmem [resolvable:$true] %s17
      %23 = dma.hbm_to_vmem [thread:$0]  %s0, 14336, %s18, [#allocation4], 256, 256, 16
    $region5: #{mlp2.1} parent=1 // pred_fallthru
      _
    // Predicated region
    $region6: #{mlp2.1} parent=1 // pred_check
      _
    $region7: #{mlp2.1} parent=1 // pred_check_branch
      %25 = sbr.rel (0) target = $region9
    $region8: #{mlp2.1} parent=1 // pred_region
      _
    $region9: #{mlp2.1} parent=1 // pred_fallthru
      _
    // Predicated region
    $region10: #{mlp2.1} parent=1 // pred_check
      _
    $region11: #{mlp2.1} parent=1 // pred_check_branch
      %27 = sbr.rel (0) target = $region13
    $region12: #{mlp2.1} parent=1 // pred_region
      _
    $region13: #{mlp2.1} parent=1 // pred_fallthru
      _
    // Predicated region
    $region14: #{mlp2.1} parent=1 // pred_check
      _
    $region15: #{mlp2.1} parent=1 // pred_check_branch
      %29 = sbr.rel (0) target = $region17
    $region16: #{mlp2.1} parent=1 // pred_region
      _
    $region17: #{mlp2.1} parent=1 // pred_fallthru
      _
    // Predicated region
    $region18: #{mlp2.1} parent=1 // pred_check
      _
    $region19: #{mlp2.1} parent=1 // pred_check_branch
      %31 = sbr.rel (0) target = $region21
    $region20: #{mlp2.1} parent=1 // pred_region
      _
    $region21: #{mlp2.1} parent=1 // pred_fallthru
      _
    // Predicated region
    $region22: #{mlp2.1} parent=1 // pred_check
      _
    $region23: #{mlp2.1} parent=1 // pred_check_branch
      %33 = sbr.rel (0) target = $region25
    $region24: #{mlp2.1} parent=1 // pred_region
      %34 = dma.done [#allocation4], 14336
    $region25: #{mlp2.1} parent=1 // pred_fallthru
      _
    %v36 = vld [vmem:[#allocation3] sm:$0xff]
    %v37 = vld [vmem:[#allocation3 + $0x8] sm:$0xff]
    %v38 = vld [vmem:[#allocation3 + $0x10] sm:$0xff]
    %v39 = vld [vmem:[#allocation3 + $0x18] sm:$0xff]
    %v40 = vld [vmem:[#allocation3 + $0x20] sm:$0xff]
    %v41 = vld [vmem:[#allocation3 + $0x28] sm:$0xff]
    %v42 = vld [vmem:[#allocation3 + $0x30] sm:$0xff]
    %v43 = vld [vmem:[#allocation3 + $0x38] sm:$0xff]
    %v44 = vld [vmem:[#allocation3 + $0x40] sm:$0xff]
    %v45 = vld [vmem:[#allocation3 + $0x48] sm:$0xff]
    %v46 = vld [vmem:[#allocation3 + $0x50] sm:$0xff]
    %v47 = vld [vmem:[#allocation3 + $0x58] sm:$0xff]
    %v48 = vld [vmem:[#allocation3 + $0x60] sm:$0xff]
    %v49 = vld [vmem:[#allocation3 + $0x68] sm:$0xff]
    %v50 = vld [vmem:[#allocation3 + $0x70] sm:$0xff]
    %v51 = vld [vmem:[#allocation3 + $0x78] sm:$0xff]
    %v52 = vld [vmem:[#allocation3 + $0x80] sm:$0xff]
    %v53 = vld [vmem:[#allocation3 + $0x88] sm:$0xff]
    %v54 = vld [vmem:[#allocation3 + $0x90] sm:$0xff]
    %v55 = vld [vmem:[#allocation3 + $0x98] sm:$0xff]
    %v56 = vld [vmem:[#allocation3 + $0xa0] sm:$0xff]
    %v57 = vld [vmem:[#allocation3 + $0xa8] sm:$0xff]
    %v58 = vld [vmem:[#allocation3 + $0xb0] sm:$0xff]
    %v59 = vld [vmem:[#allocation3 + $0xb8] sm:$0xff]
    %v60 = vld [vmem:[#allocation3 + $0xc0] sm:$0xff]
    %v61 = vld [vmem:[#allocation3 + $0xc8] sm:$0xff]
    %v62 = vld [vmem:[#allocation3 + $0xd0] sm:$0xff]
    %v63 = vld [vmem:[#allocation3 + $0xd8] sm:$0xff]
    %v64 = vld [vmem:[#allocation3 + $0xe0] sm:$0xff]
    %v65 = vld [vmem:[#allocation3 + $0xe8] sm:$0xff]
    %v66 = vld [vmem:[#allocation3 + $0xf0] sm:$0xff]
    %v67 = vld [vmem:[#allocation3 + $0xf8] sm:$0xff]
    %v68 = vld [vmem:[#allocation3 + $0x100] sm:$0xff]
    %v69 = vld [vmem:[#allocation3 + $0x108] sm:$0xff]
    %v70 = vld [vmem:[#allocation3 + $0x110] sm:$0xff]
    %v71 = vld [vmem:[#allocation3 + $0x118] sm:$0xff]
    %v72 = vld [vmem:[#allocation3 + $0x120] sm:$0xff]
    %v73 = vld [vmem:[#allocation3 + $0x128] sm:$0xff]
    %v74 = vld [vmem:[#allocation3 + $0x130] sm:$0xff]
    %v75 = vld [vmem:[#allocation3 + $0x138] sm:$0xff]
    %v76 = vld [vmem:[#allocation3 + $0x140] sm:$0xff]
    %v77 = vld [vmem:[#allocation3 + $0x148] sm:$0xff]
    %v78 = vld [vmem:[#allocation3 + $0x150] sm:$0xff]
    %v79 = vld [vmem:[#allocation3 + $0x158] sm:$0xff]
    %v80 = vld [vmem:[#allocation3 + $0x160] sm:$0xff]
    %v81 = vld [vmem:[#allocation3 + $0x168] sm:$0xff]
    %v82 = vld [vmem:[#allocation3 + $0x170] sm:$0xff]
    %v83 = vld [vmem:[#allocation3 + $0x178] sm:$0xff]
    %v84 = vld [vmem:[#allocation3 + $0x180] sm:$0xff]
    %v85 = vld [vmem:[#allocation3 + $0x188] sm:$0xff]
    %v86 = vld [vmem:[#allocation3 + $0x190] sm:$0xff]
    %v87 = vld [vmem:[#allocation3 + $0x198] sm:$0xff]
    %v88 = vld [vmem:[#allocation3 + $0x1a0] sm:$0xff]
    %v89 = vld [vmem:[#allocation3 + $0x1a8] sm:$0xff]
    %v90 = vld [vmem:[#allocation3 + $0x1b0] sm:$0xff]
    %v91 = vld [vmem:[#allocation3 + $0x1b8] sm:$0xff]
    %v92 = vld [vmem:[#allocation3 + $0x1c0] sm:$0xff]
    %v93 = vld [vmem:[#allocation3 + $0x1c8] sm:$0xff]
    %v94 = vld [vmem:[#allocation3 + $0x1d0] sm:$0xff]
    %v95 = vld [vmem:[#allocation3 + $0x1d8] sm:$0xff]
    %v96 = vld [vmem:[#allocation3 + $0x1e0] sm:$0xff]
    %v97 = vld [vmem:[#allocation3 + $0x1e8] sm:$0xff]
    %v98 = vld [vmem:[#allocation3 + $0x1f0] sm:$0xff]
    %v99 = vld [vmem:[#allocation3 + $0x1f8] sm:$0xff]
    %v100 = vld [vmem:[#allocation3 + $0x200] sm:$0xff]
    %v101 = vld [vmem:[#allocation3 + $0x208] sm:$0xff]
    %v102 = vld [vmem:[#allocation3 + $0x210] sm:$0xff]
    %v103 = vld [vmem:[#allocation3 + $0x218] sm:$0xff]
    %v104 = vld [vmem:[#allocation3 + $0x220] sm:$0xff]
    %v105 = vld [vmem:[#allocation3 + $0x228] sm:$0xff]
    %v106 = vld [vmem:[#allocation3 + $0x230] sm:$0xff]
    %v107 = vld [vmem:[#allocation3 + $0x238] sm:$0xff]
    %v108 = vld [vmem:[#allocation3 + $0x240] sm:$0xff]
    %v109 = vld [vmem:[#allocation3 + $0x248] sm:$0xff]
    %v110 = vld [vmem:[#allocation3 + $0x250] sm:$0xff]
    %v111 = vld [vmem:[#allocation3 + $0x258] sm:$0xff]
    %v112 = vld [vmem:[#allocation3 + $0x260] sm:$0xff]
    %v113 = vld [vmem:[#allocation3 + $0x268] sm:$0xff]
    %v114 = vld [vmem:[#allocation3 + $0x270] sm:$0xff]
    %v115 = vld [vmem:[#allocation3 + $0x278] sm:$0xff]
    %v116 = vld [vmem:[#allocation3 + $0x280] sm:$0xff]
    %v117 = vld [vmem:[#allocation3 + $0x288] sm:$0xff]
    %v118 = vld [vmem:[#allocation3 + $0x290] sm:$0xff]
    %v119 = vld [vmem:[#allocation3 + $0x298] sm:$0xff]
    %v120 = vld [vmem:[#allocation3 + $0x2a0] sm:$0xff]
    %v121 = vld [vmem:[#allocation3 + $0x2a8] sm:$0xff]
    %v122 = vld [vmem:[#allocation3 + $0x2b0] sm:$0xff]
    %v123 = vld [vmem:[#allocation3 + $0x2b8] sm:$0xff]
    %v124 = vld [vmem:[#allocation3 + $0x2c0] sm:$0xff]
    %v125 = vld [vmem:[#allocation3 + $0x2c8] sm:$0xff]
    %v126 = vld [vmem:[#allocation3 + $0x2d0] sm:$0xff]
    %v127 = vld [vmem:[#allocation3 + $0x2d8] sm:$0xff]
    %v128 = vld [vmem:[#allocation3 + $0x2e0] sm:$0xff]
    %v129 = vld [vmem:[#allocation3 + $0x2e8] sm:$0xff]
    %v130 = vld [vmem:[#allocation3 + $0x2f0] sm:$0xff]
    %v131 = vld [vmem:[#allocation3 + $0x2f8] sm:$0xff]
    %v132 = vld [vmem:[#allocation3 + $0x300] sm:$0xff]
    %v133 = vld [vmem:[#allocation3 + $0x308] sm:$0xff]
    %v134 = vld [vmem:[#allocation3 + $0x310] sm:$0xff]
    %v135 = vld [vmem:[#allocation3 + $0x318] sm:$0xff]
    %v136 = vld [vmem:[#allocation3 + $0x320] sm:$0xff]
    %v137 = vld [vmem:[#allocation3 + $0x328] sm:$0xff]
    %v138 = vld [vmem:[#allocation3 + $0x330] sm:$0xff]
    %v139 = vld [vmem:[#allocation3 + $0x338] sm:$0xff]
    %v140 = vld [vmem:[#allocation3 + $0x340] sm:$0xff]
    %v141 = vld [vmem:[#allocation3 + $0x348] sm:$0xff]
    %v142 = vld [vmem:[#allocation3 + $0x350] sm:$0xff]
    %v143 = vld [vmem:[#allocation3 + $0x358] sm:$0xff]
    %v144 = vld [vmem:[#allocation3 + $0x360] sm:$0xff]
    %v145 = vld [vmem:[#allocation3 + $0x368] sm:$0xff]
    %v146 = vld [vmem:[#allocation3 + $0x370] sm:$0xff]
    %v147 = vld [vmem:[#allocation3 + $0x378] sm:$0xff]
    %v148 = vpack.c.bf16 %v38, %v36
    %v149 = vpack.c.bf16 %v39, %v37
    %v150 = vpack.c.bf16 %v42, %v40
    %v151 = vpack.c.bf16 %v43, %v41
    %v152 = vpack.c.bf16 %v46, %v44
    %v153 = vpack.c.bf16 %v47, %v45
    %v154 = vpack.c.bf16 %v50, %v48
    %v155 = vpack.c.bf16 %v51, %v49
    %v156 = vpack.c.bf16 %v54, %v52
    %v157 = vpack.c.bf16 %v55, %v53
    %v158 = vpack.c.bf16 %v58, %v56
    %v159 = vpack.c.bf16 %v59, %v57
    %v160 = vpack.c.bf16 %v62, %v60
    %v161 = vpack.c.bf16 %v63, %v61
    %v162 = vpack.c.bf16 %v66, %v64
    %v163 = vpack.c.bf16 %v67, %v65
    %v164 = vpack.c.bf16 %v70, %v68
    %v165 = vpack.c.bf16 %v71, %v69
    %v166 = vpack.c.bf16 %v74, %v72
    %v167 = vpack.c.bf16 %v75, %v73
    %v168 = vpack.c.bf16 %v78, %v76
    %v169 = vpack.c.bf16 %v79, %v77
    %v170 = vpack.c.bf16 %v82, %v80
    %v171 = vpack.c.bf16 %v83, %v81
    %v172 = vpack.c.bf16 %v86, %v84
    %v173 = vpack.c.bf16 %v87, %v85
    %v174 = vpack.c.bf16 %v90, %v88
    %v175 = vpack.c.bf16 %v91, %v89
    %v176 = vpack.c.bf16 %v94, %v92
    %v177 = vpack.c.bf16 %v95, %v93
    %v178 = vpack.c.bf16 %v98, %v96
    %v179 = vpack.c.bf16 %v99, %v97
    %v180 = vpack.c.bf16 %v102, %v100
    %v181 = vpack.c.bf16 %v103, %v101
    %v182 = vpack.c.bf16 %v106, %v104
    %v183 = vpack.c.bf16 %v107, %v105
    %v184 = vpack.c.bf16 %v110, %v108
    %v185 = vpack.c.bf16 %v111, %v109
    %v186 = vpack.c.bf16 %v114, %v112
    %v187 = vpack.c.bf16 %v115, %v113
    %v188 = vpack.c.bf16 %v118, %v116
    %v189 = vpack.c.bf16 %v119, %v117
    %v190 = vpack.c.bf16 %v122, %v120
    %v191 = vpack.c.bf16 %v123, %v121
    %v192 = vpack.c.bf16 %v126, %v124
    %v193 = vpack.c.bf16 %v127, %v125
    %v194 = vpack.c.bf16 %v130, %v128
    %v195 = vpack.c.bf16 %v131, %v129
    %v196 = vpack.c.bf16 %v134, %v132
    %v197 = vpack.c.bf16 %v135, %v133
    %v198 = vpack.c.bf16 %v138, %v136
    %v199 = vpack.c.bf16 %v139, %v137
    %v200 = vpack.c.bf16 %v142, %v140
    %v201 = vpack.c.bf16 %v143, %v141
    %v202 = vpack.c.bf16 %v146, %v144
    %v203 = vpack.c.bf16 %v147, %v145
    %v204 = vld [vmem:[%s1] sm:$0xff]
    %v205 = vld [vmem:[%s1 + $0x8] sm:$0xff]
    %v206 = vld [vmem:[%s1 + $0x10] sm:$0xff]
    %v207 = vld [vmem:[%s1 + $0x18] sm:$0xff]
    %v208 = vld [vmem:[%s1 + $0x20] sm:$0xff]
    %v209 = vld [vmem:[%s1 + $0x28] sm:$0xff]
    %v210 = vld [vmem:[%s1 + $0x30] sm:$0xff]
    %v211 = vld [vmem:[%s1 + $0x38] sm:$0xff]
    %v212 = vld [vmem:[%s1 + $0x40] sm:$0xff]
    %v213 = vld [vmem:[%s1 + $0x48] sm:$0xff]
    %v214 = vld [vmem:[%s1 + $0x50] sm:$0xff]
    %v215 = vld [vmem:[%s1 + $0x58] sm:$0xff]
    %v216 = vld [vmem:[%s1 + $0x60] sm:$0xff]
    %v217 = vld [vmem:[%s1 + $0x68] sm:$0xff]
    %v218 = vld [vmem:[%s1 + $0x70] sm:$0xff]
    %v219 = vld [vmem:[%s1 + $0x78] sm:$0xff]
    %v220 = vld [vmem:[%s1 + $0x80] sm:$0xff]
    %v221 = vld [vmem:[%s1 + $0x88] sm:$0xff]
    %v222 = vld [vmem:[%s1 + $0x90] sm:$0xff]
    %v223 = vld [vmem:[%s1 + $0x98] sm:$0xff]
    %v224 = vld [vmem:[%s1 + $0xa0] sm:$0xff]
    %v225 = vld [vmem:[%s1 + $0xa8] sm:$0xff]
    %v226 = vld [vmem:[%s1 + $0xb0] sm:$0xff]
    %v227 = vld [vmem:[%s1 + $0xb8] sm:$0xff]
    %v228 = vld [vmem:[%s1 + $0xc0] sm:$0xff]
    %v229 = vld [vmem:[%s1 + $0xc8] sm:$0xff]
    %v230 = vld [vmem:[%s1 + $0xd0] sm:$0xff]
    %v231 = vld [vmem:[%s1 + $0xd8] sm:$0xff]
    %v232 = vld [vmem:[%s2] sm:$0x3]
    %v234 = vlaneseq
    %v235 = vshrl.u32 %v234, 7
    %v236 = vsub.s32 0, %v235
    %v237 = vrot.slane %v232, %v236
    %v238 = vlaneseq
    %v239 = vshrl.u32 %v238, 7
    %v240 = vsub.s32 1, %v239
    %v241 = vrot.slane %v232, %v240
    %v272 = vunpack.c.l.b16 %v204
    %v273 = vunpack.c.h.b16 %v204
    %v274 = vunpack.c.l.b16 %v205
    %v275 = vunpack.c.h.b16 %v205
    %v276 = vunpack.c.l.b16 %v206
    %v277 = vunpack.c.h.b16 %v206
    %v278 = vunpack.c.l.b16 %v207
    %v279 = vunpack.c.h.b16 %v207
    %v280 = vunpack.c.l.b16 %v208
    %v281 = vunpack.c.h.b16 %v208
    %v282 = vunpack.c.l.b16 %v209
    %v283 = vunpack.c.h.b16 %v209
    %v284 = vunpack.c.l.b16 %v210
    %v285 = vunpack.c.h.b16 %v210
    %v286 = vunpack.c.l.b16 %v211
    %v287 = vunpack.c.h.b16 %v211
    %v288 = vunpack.c.l.b16 %v212
    %v289 = vunpack.c.h.b16 %v212
    %v290 = vunpack.c.l.b16 %v213
    %v291 = vunpack.c.h.b16 %v213
    %v292 = vunpack.c.l.b16 %v214
    %v293 = vunpack.c.h.b16 %v214
    %v294 = vunpack.c.l.b16 %v215
    %v295 = vunpack.c.h.b16 %v215
    %v296 = vunpack.c.l.b16 %v216
    %v297 = vunpack.c.h.b16 %v216
    %v298 = vunpack.c.l.b16 %v217
    %v299 = vunpack.c.h.b16 %v217
    %v300 = vunpack.c.l.b16 %v218
    %v301 = vunpack.c.h.b16 %v218
    %v302 = vunpack.c.l.b16 %v219
    %v303 = vunpack.c.h.b16 %v219
    %v304 = vunpack.c.l.b16 %v220
    %v305 = vunpack.c.h.b16 %v220
    %v306 = vunpack.c.l.b16 %v221
    %v307 = vunpack.c.h.b16 %v221
    %v308 = vunpack.c.l.b16 %v222
    %v309 = vunpack.c.h.b16 %v222
    %v310 = vunpack.c.l.b16 %v223
    %v311 = vunpack.c.h.b16 %v223
    %v312 = vunpack.c.l.b16 %v224
    %v313 = vunpack.c.h.b16 %v224
    %v314 = vunpack.c.l.b16 %v225
    %v315 = vunpack.c.h.b16 %v225
    %v316 = vunpack.c.l.b16 %v226
    %v317 = vunpack.c.h.b16 %v226
    %v318 = vunpack.c.l.b16 %v227
    %v319 = vunpack.c.h.b16 %v227
    %v320 = vunpack.c.l.b16 %v228
    %v321 = vunpack.c.h.b16 %v228
    %v322 = vunpack.c.l.b16 %v229
    %v323 = vunpack.c.h.b16 %v229
    %v324 = vunpack.c.l.b16 %v230
    %v325 = vunpack.c.h.b16 %v230
    %v326 = vunpack.c.l.b16 %v231
    %v327 = vunpack.c.h.b16 %v231
    %v328 = vpack.c.b16 %v274, %v272
    %v329 = vpack.c.b16 %v275, %v273
    %v330 = vpack.c.b16 %v278, %v276
    %v331 = vpack.c.b16 %v279, %v277
    %v332 = vpack.c.b16 %v282, %v280
    %v333 = vpack.c.b16 %v283, %v281
    %v334 = vpack.c.b16 %v286, %v284
    %v335 = vpack.c.b16 %v287, %v285
    %v336 = vpack.c.b16 %v290, %v288
    %v337 = vpack.c.b16 %v291, %v289
    %v338 = vpack.c.b16 %v294, %v292
    %v339 = vpack.c.b16 %v295, %v293
    %v340 = vpack.c.b16 %v298, %v296
    %v341 = vpack.c.b16 %v299, %v297
    %v342 = vpack.c.b16 %v302, %v300
    %v343 = vpack.c.b16 %v303, %v301
    %v344 = vpack.c.b16 %v306, %v304
    %v345 = vpack.c.b16 %v307, %v305
    %v346 = vpack.c.b16 %v310, %v308
    %v347 = vpack.c.b16 %v311, %v309
    %v348 = vpack.c.b16 %v314, %v312
    %v349 = vpack.c.b16 %v315, %v313
    %v350 = vpack.c.b16 %v318, %v316
    %v351 = vpack.c.b16 %v319, %v317
    %v352 = vpack.c.b16 %v322, %v320
    %v353 = vpack.c.b16 %v323, %v321
    %v354 = vpack.c.b16 %v326, %v324
    %v355 = vpack.c.b16 %v327, %v325
    %vm384 = vcmask 785408
    %v386 = vsel %vm384, %v149, 0
    %v389 = vsel %vm384, %v151, 0
    %v392 = vsel %vm384, %v153, 0
    %v395 = vsel %vm384, %v155, 0
    %v398 = vsel %vm384, %v157, 0
    %v401 = vsel %vm384, %v159, 0
    %v404 = vsel %vm384, %v161, 0
    %v407 = vsel %vm384, %v163, 0
    %v410 = vsel %vm384, %v165, 0
    %v413 = vsel %vm384, %v167, 0
    %v416 = vsel %vm384, %v169, 0
    %v419 = vsel %vm384, %v171, 0
    %v422 = vsel %vm384, %v173, 0
    %v425 = vsel %vm384, %v175, 0
    %v428 = vsel %vm384, %v177, 0
    %v431 = vsel %vm384, %v179, 0
    %v434 = vsel %vm384, %v181, 0
    %v437 = vsel %vm384, %v183, 0
    %v440 = vsel %vm384, %v185, 0
    %v443 = vsel %vm384, %v187, 0
    %v446 = vsel %vm384, %v189, 0
    %v449 = vsel %vm384, %v191, 0
    %v452 = vsel %vm384, %v193, 0
    %v455 = vsel %vm384, %v195, 0
    %v458 = vsel %vm384, %v197, 0
    %v461 = vsel %vm384, %v199, 0
    %v464 = vsel %vm384, %v201, 0
    %v467 = vsel %vm384, %v203, 0
    %469 = vmatprep.subr.bf16.mxu0 %v329
    %470 = vmatpush1.bf16.msra.mxu0 %v328
    %471 = vmatprep.subr.bf16.mxu0 %v331
    %472 = vmatpush1.bf16.msra.mxu0 %v330
    %473 = vmatprep.subr.bf16.mxu0 %v333
    %474 = vmatpush1.bf16.msra.mxu0 %v332
    %475 = vmatprep.subr.bf16.mxu0 %v335
    %476 = vmatpush1.bf16.msra.mxu0 %v334
    %477 = vmatprep.subr.bf16.mxu0 %v337
    %478 = vmatpush1.bf16.msra.mxu0 %v336
    %479 = vmatprep.subr.bf16.mxu0 %v339
    %480 = vmatpush1.bf16.msra.mxu0 %v338
    %481 = vmatprep.subr.bf16.mxu0 %v341
    %482 = vmatpush1.bf16.msra.mxu0 %v340
    %483 = vmatprep.subr.bf16.mxu0 %v343
    %484 = vmatpush1.bf16.msra.mxu0 %v342
    %485 = vmatprep.subr.bf16.mxu0 %v345
    %486 = vmatpush1.bf16.msra.mxu0 %v344
    %487 = vmatprep.subr.bf16.mxu0 %v347
    %488 = vmatpush1.bf16.msra.mxu0 %v346
    %489 = vmatprep.subr.bf16.mxu0 %v349
    %490 = vmatpush1.bf16.msra.mxu0 %v348
    %491 = vmatprep.subr.bf16.mxu0 %v351
    %492 = vmatpush1.bf16.msra.mxu0 %v350
    %493 = vmatprep.subr.bf16.mxu0 %v353
    %494 = vmatpush1.bf16.msra.mxu0 %v352
    %495 = vmatprep.subr.bf16.mxu0 %v355
    %496 = vmatpush1.bf16.msra.mxu0 %v354
    %497 = vmatprep.subr.bf16.mxu0 0
    %498 = vmatpush1.bf16.msra.mxu0 0
    %499 = vmatprep.subr.bf16.mxu0 0
    %500 = vmatpush1.bf16.msra.mxu0 0
    %501 = vmatprep.mubr.bf16.mxu0 %v386
    %502 = vmatmul.mubr.bf16.gmra.mrb[0].mxu0 %v148
    %v503 = vpop.f32.mrb[0].mxu0
    %v504 = vadd.f32 %v237, %v503
    %v505 = vpop.f32.mrb[0].mxu0
    %v506 = vadd.f32 %v241, %v505
    %v507 = vpop.f32.mrb[0].mxu0
    %v508 = vadd.f32 %v237, %v507
    %v509 = vpop.f32.mrb[0].mxu0
    %v510 = vadd.f32 %v241, %v509
    %511 = vmatprep.mubr.bf16.mxu0 %v389
    %512 = vmatmul.mubr.bf16.gmra.mrb[0].mxu0 %v150
    %v513 = vpop.f32.mrb[0].mxu0
    %v514 = vadd.f32 %v237, %v513
    %v515 = vpop.f32.mrb[0].mxu0
    %v516 = vadd.f32 %v241, %v515
    %v517 = vpop.f32.mrb[0].mxu0
    %v518 = vadd.f32 %v237, %v517
    %v519 = vpop.f32.mrb[0].mxu0
    %v520 = vadd.f32 %v241, %v519
    %521 = vmatprep.mubr.bf16.mxu0 %v392
    %522 = vmatmul.mubr.bf16.gmra.mrb[0].mxu0 %v152
    %v523 = vpop.f32.mrb[0].mxu0
    %v524 = vadd.f32 %v237, %v523
    %v525 = vpop.f32.mrb[0].mxu0
    %v526 = vadd.f32 %v241, %v525
    %v527 = vpop.f32.mrb[0].mxu0
    %v528 = vadd.f32 %v237, %v527
    %v529 = vpop.f32.mrb[0].mxu0
    %v530 = vadd.f32 %v241, %v529
    %531 = vmatprep.mubr.bf16.mxu0 %v395
    %532 = vmatmul.mubr.bf16.gmra.mrb[0].mxu0 %v154
    %v533 = vpop.f32.mrb[0].mxu0
    %v534 = vadd.f32 %v237, %v533
    %v535 = vpop.f32.mrb[0].mxu0
    %v536 = vadd.f32 %v241, %v535
    %v537 = vpop.f32.mrb[0].mxu0
    %v538 = vadd.f32 %v237, %v537
    %v539 = vpop.f32.mrb[0].mxu0
    %v540 = vadd.f32 %v241, %v539
    %541 = vmatprep.mubr.bf16.mxu0 %v398
    %542 = vmatmul.mubr.bf16.gmra.mrb[0].mxu0 %v156
    %v543 = vpop.f32.mrb[0].mxu0
    %v544 = vadd.f32 %v237, %v543
    %v545 = vpop.f32.mrb[0].mxu0
    %v546 = vadd.f32 %v241, %v545
    %v547 = vpop.f32.mrb[0].mxu0
    %v548 = vadd.f32 %v237, %v547
    %v549 = vpop.f32.mrb[0].mxu0
    %v550 = vadd.f32 %v241, %v549
    %551 = vmatprep.mubr.bf16.mxu0 %v401
    %552 = vmatmul.mubr.bf16.gmra.mrb[0].mxu0 %v158
    %v553 = vpop.f32.mrb[0].mxu0
    %v554 = vadd.f32 %v237, %v553
    %v555 = vpop.f32.mrb[0].mxu0
    %v556 = vadd.f32 %v241, %v555
    %v557 = vpop.f32.mrb[0].mxu0
    %v558 = vadd.f32 %v237, %v557
    %v559 = vpop.f32.mrb[0].mxu0
    %v560 = vadd.f32 %v241, %v559
    %561 = vmatprep.mubr.bf16.mxu0 %v404
    %562 = vmatmul.mubr.bf16.gmra.mrb[0].mxu0 %v160
    %v563 = vpop.f32.mrb[0].mxu0
    %v564 = vadd.f32 %v237, %v563
    %v565 = vpop.f32.mrb[0].mxu0
    %v566 = vadd.f32 %v241, %v565
    %v567 = vpop.f32.mrb[0].mxu0
    %v568 = vadd.f32 %v237, %v567
    %v569 = vpop.f32.mrb[0].mxu0
    %v570 = vadd.f32 %v241, %v569
    %571 = vmatprep.mubr.bf16.mxu0 %v407
    %572 = vmatmul.mubr.bf16.gmra.mrb[0].mxu0 %v162
    %v573 = vpop.f32.mrb[0].mxu0
    %v574 = vadd.f32 %v237, %v573
    %v575 = vpop.f32.mrb[0].mxu0
    %v576 = vadd.f32 %v241, %v575
    %v577 = vpop.f32.mrb[0].mxu0
    %v578 = vadd.f32 %v237, %v577
    %v579 = vpop.f32.mrb[0].mxu0
    %v580 = vadd.f32 %v241, %v579
    %581 = vmatprep.mubr.bf16.mxu0 %v410
    %582 = vmatmul.mubr.bf16.gmra.mrb[0].mxu0 %v164
    %v583 = vpop.f32.mrb[0].mxu0
    %v584 = vadd.f32 %v237, %v583
    %v585 = vpop.f32.mrb[0].mxu0
    %v586 = vadd.f32 %v241, %v585
    %v587 = vpop.f32.mrb[0].mxu0
    %v588 = vadd.f32 %v237, %v587
    %v589 = vpop.f32.mrb[0].mxu0
    %v590 = vadd.f32 %v241, %v589
    %591 = vmatprep.mubr.bf16.mxu0 %v413
    %592 = vmatmul.mubr.bf16.gmra.mrb[0].mxu0 %v166
    %v593 = vpop.f32.mrb[0].mxu0
    %v594 = vadd.f32 %v237, %v593
    %v595 = vpop.f32.mrb[0].mxu0
    %v596 = vadd.f32 %v241, %v595
    %v597 = vpop.f32.mrb[0].mxu0
    %v598 = vadd.f32 %v237, %v597
    %v599 = vpop.f32.mrb[0].mxu0
    %v600 = vadd.f32 %v241, %v599
    %601 = vmatprep.mubr.bf16.mxu0 %v416
    %602 = vmatmul.mubr.bf16.gmra.mrb[0].mxu0 %v168
    %v603 = vpop.f32.mrb[0].mxu0
    %v604 = vadd.f32 %v237, %v603
    %v605 = vpop.f32.mrb[0].mxu0
    %v606 = vadd.f32 %v241, %v605
    %v607 = vpop.f32.mrb[0].mxu0
    %v608 = vadd.f32 %v237, %v607
    %v609 = vpop.f32.mrb[0].mxu0
    %v610 = vadd.f32 %v241, %v609
    %611 = vmatprep.mubr.bf16.mxu0 %v419
    %612 = vmatmul.mubr.bf16.gmra.mrb[0].mxu0 %v170
    %v613 = vpop.f32.mrb[0].mxu0
    %v614 = vadd.f32 %v237, %v613
    %v615 = vpop.f32.mrb[0].mxu0
    %v616 = vadd.f32 %v241, %v615
    %v617 = vpop.f32.mrb[0].mxu0
    %v618 = vadd.f32 %v237, %v617
    %v619 = vpop.f32.mrb[0].mxu0
    %v620 = vadd.f32 %v241, %v619
    %621 = vmatprep.mubr.bf16.mxu0 %v422
    %622 = vmatmul.mubr.bf16.gmra.mrb[0].mxu0 %v172
    %v623 = vpop.f32.mrb[0].mxu0
    %v624 = vadd.f32 %v237, %v623
    %v625 = vpop.f32.mrb[0].mxu0
    %v626 = vadd.f32 %v241, %v625
    %v627 = vpop.f32.mrb[0].mxu0
    %v628 = vadd.f32 %v237, %v627
    %v629 = vpop.f32.mrb[0].mxu0
    %v630 = vadd.f32 %v241, %v629
    %631 = vmatprep.mubr.bf16.mxu0 %v425
    %632 = vmatmul.mubr.bf16.gmra.mrb[0].mxu0 %v174
    %v633 = vpop.f32.mrb[0].mxu0
    %v634 = vadd.f32 %v237, %v633
    %v635 = vpop.f32.mrb[0].mxu0
    %v636 = vadd.f32 %v241, %v635
    %v637 = vpop.f32.mrb[0].mxu0
    %v638 = vadd.f32 %v237, %v637
    %v639 = vpop.f32.mrb[0].mxu0
    %v640 = vadd.f32 %v241, %v639
    %641 = vmatprep.mubr.bf16.mxu0 %v428
    %642 = vmatmul.mubr.bf16.gmra.mrb[0].mxu0 %v176
    %v643 = vpop.f32.mrb[0].mxu0
    %v644 = vadd.f32 %v237, %v643
    %v645 = vpop.f32.mrb[0].mxu0
    %v646 = vadd.f32 %v241, %v645
    %v647 = vpop.f32.mrb[0].mxu0
    %v648 = vadd.f32 %v237, %v647
    %v649 = vpop.f32.mrb[0].mxu0
    %v650 = vadd.f32 %v241, %v649
    %651 = vmatprep.mubr.bf16.mxu0 %v431
    %652 = vmatmul.mubr.bf16.gmra.mrb[0].mxu0 %v178
    %v653 = vpop.f32.mrb[0].mxu0
    %v654 = vadd.f32 %v237, %v653
    %v655 = vpop.f32.mrb[0].mxu0
    %v656 = vadd.f32 %v241, %v655
    %v657 = vpop.f32.mrb[0].mxu0
    %v658 = vadd.f32 %v237, %v657
    %v659 = vpop.f32.mrb[0].mxu0
    %v660 = vadd.f32 %v241, %v659
    %661 = vmatprep.mubr.bf16.mxu0 %v434
    %662 = vmatmul.mubr.bf16.gmra.mrb[0].mxu0 %v180
    %v663 = vpop.f32.mrb[0].mxu0
    %v664 = vadd.f32 %v237, %v663
    %v665 = vpop.f32.mrb[0].mxu0
    %v666 = vadd.f32 %v241, %v665
    %v667 = vpop.f32.mrb[0].mxu0
    %v668 = vadd.f32 %v237, %v667
    %v669 = vpop.f32.mrb[0].mxu0
    %v670 = vadd.f32 %v241, %v669
    %671 = vmatprep.mubr.bf16.mxu0 %v437
    %672 = vmatmul.mubr.bf16.gmra.mrb[0].mxu0 %v182
    %v673 = vpop.f32.mrb[0].mxu0
    %v674 = vadd.f32 %v237, %v673
    %v675 = vpop.f32.mrb[0].mxu0
    %v676 = vadd.f32 %v241, %v675
    %v677 = vpop.f32.mrb[0].mxu0
    %v678 = vadd.f32 %v237, %v677
    %v679 = vpop.f32.mrb[0].mxu0
    %v680 = vadd.f32 %v241, %v679
    %681 = vmatprep.mubr.bf16.mxu0 %v440
    %682 = vmatmul.mubr.bf16.gmra.mrb[0].mxu0 %v184
    %v683 = vpop.f32.mrb[0].mxu0
    %v684 = vadd.f32 %v237, %v683
    %v685 = vpop.f32.mrb[0].mxu0
    %v686 = vadd.f32 %v241, %v685
    %v687 = vpop.f32.mrb[0].mxu0
    %v688 = vadd.f32 %v237, %v687
    %v689 = vpop.f32.mrb[0].mxu0
    %v690 = vadd.f32 %v241, %v689
    %691 = vmatprep.mubr.bf16.mxu0 %v443
    %692 = vmatmul.mubr.bf16.gmra.mrb[0].mxu0 %v186
    %v693 = vpop.f32.mrb[0].mxu0
    %v694 = vadd.f32 %v237, %v693
    %v695 = vpop.f32.mrb[0].mxu0
    %v696 = vadd.f32 %v241, %v695
    %v697 = vpop.f32.mrb[0].mxu0
    %v698 = vadd.f32 %v237, %v697
    %v699 = vpop.f32.mrb[0].mxu0
    %v700 = vadd.f32 %v241, %v699
    %701 = vmatprep.mubr.bf16.mxu0 %v446
    %702 = vmatmul.mubr.bf16.gmra.mrb[0].mxu0 %v188
    %v703 = vpop.f32.mrb[0].mxu0
    %v704 = vadd.f32 %v237, %v703
    %v705 = vpop.f32.mrb[0].mxu0
    %v706 = vadd.f32 %v241, %v705
    %v707 = vpop.f32.mrb[0].mxu0
    %v708 = vadd.f32 %v237, %v707
    %v709 = vpop.f32.mrb[0].mxu0
    %v710 = vadd.f32 %v241, %v709
    %711 = vmatprep.mubr.bf16.mxu0 %v449
    %712 = vmatmul.mubr.bf16.gmra.mrb[0].mxu0 %v190
    %v713 = vpop.f32.mrb[0].mxu0
    %v714 = vadd.f32 %v237, %v713
    %v715 = vpop.f32.mrb[0].mxu0
    %v716 = vadd.f32 %v241, %v715
    %v717 = vpop.f32.mrb[0].mxu0
    %v718 = vadd.f32 %v237, %v717
    %v719 = vpop.f32.mrb[0].mxu0
    %v720 = vadd.f32 %v241, %v719
    %721 = vmatprep.mubr.bf16.mxu0 %v452
    %722 = vmatmul.mubr.bf16.gmra.mrb[0].mxu0 %v192
    %v723 = vpop.f32.mrb[0].mxu0
    %v724 = vadd.f32 %v237, %v723
    %v725 = vpop.f32.mrb[0].mxu0
    %v726 = vadd.f32 %v241, %v725
    %v727 = vpop.f32.mrb[0].mxu0
    %v728 = vadd.f32 %v237, %v727
    %v729 = vpop.f32.mrb[0].mxu0
    %v730 = vadd.f32 %v241, %v729
    %731 = vmatprep.mubr.bf16.mxu0 %v455
    %732 = vmatmul.mubr.bf16.gmra.mrb[0].mxu0 %v194
    %v733 = vpop.f32.mrb[0].mxu0
    %v734 = vadd.f32 %v237, %v733
    %v735 = vpop.f32.mrb[0].mxu0
    %v736 = vadd.f32 %v241, %v735
    %v737 = vpop.f32.mrb[0].mxu0
    %v738 = vadd.f32 %v237, %v737
    %v739 = vpop.f32.mrb[0].mxu0
    %v740 = vadd.f32 %v241, %v739
    %741 = vmatprep.mubr.bf16.mxu0 %v458
    %742 = vmatmul.mubr.bf16.gmra.mrb[0].mxu0 %v196
    %v743 = vpop.f32.mrb[0].mxu0
    %v744 = vadd.f32 %v237, %v743
    %v745 = vpop.f32.mrb[0].mxu0
    %v746 = vadd.f32 %v241, %v745
    %v747 = vpop.f32.mrb[0].mxu0
    %v748 = vadd.f32 %v237, %v747
    %v749 = vpop.f32.mrb[0].mxu0
    %v750 = vadd.f32 %v241, %v749
    %751 = vmatprep.mubr.bf16.mxu0 %v461
    %752 = vmatmul.mubr.bf16.gmra.mrb[0].mxu0 %v198
    %v753 = vpop.f32.mrb[0].mxu0
    %v754 = vadd.f32 %v237, %v753
    %v755 = vpop.f32.mrb[0].mxu0
    %v756 = vadd.f32 %v241, %v755
    %v757 = vpop.f32.mrb[0].mxu0
    %v758 = vadd.f32 %v237, %v757
    %v759 = vpop.f32.mrb[0].mxu0
    %v760 = vadd.f32 %v241, %v759
    %761 = vmatprep.mubr.bf16.mxu0 %v464
    %762 = vmatmul.mubr.bf16.gmra.mrb[0].mxu0 %v200
    %v763 = vpop.f32.mrb[0].mxu0
    %v764 = vadd.f32 %v237, %v763
    %v765 = vpop.f32.mrb[0].mxu0
    %v766 = vadd.f32 %v241, %v765
    %v767 = vpop.f32.mrb[0].mxu0
    %v768 = vadd.f32 %v237, %v767
    %v769 = vpop.f32.mrb[0].mxu0
    %v770 = vadd.f32 %v241, %v769
    %771 = vmatprep.mubr.bf16.mxu0 %v467
    %772 = vmatmul.mubr.bf16.gmra.mrb[0].mxu0 %v202
    %v773 = vpop.f32.mrb[0].mxu0
    %v774 = vadd.f32 %v237, %v773
    %v775 = vpop.f32.mrb[0].mxu0
    %v776 = vadd.f32 %v241, %v775
    %v777 = vpop.f32.mrb[0].mxu0
    %v778 = vadd.f32 %v237, %v777
    %v779 = vpop.f32.mrb[0].mxu0
    %v780 = vadd.f32 %v241, %v779
    %781 = vdwg.mxu0
    %v782 = vpack.c.bf16 %v508, %v504
    %v783 = vpack.c.bf16 %v510, %v506
    %v784 = vpack.c.bf16 %v518, %v514
    %v785 = vpack.c.bf16 %v520, %v516
    %v786 = vpack.c.bf16 %v528, %v524
    %v787 = vpack.c.bf16 %v530, %v526
    %v788 = vpack.c.bf16 %v538, %v534
    %v789 = vpack.c.bf16 %v540, %v536
    %v790 = vpack.c.bf16 %v548, %v544
    %v791 = vpack.c.bf16 %v550, %v546
    %v792 = vpack.c.bf16 %v558, %v554
    %v793 = vpack.c.bf16 %v560, %v556
    %v794 = vpack.c.bf16 %v568, %v564
    %v795 = vpack.c.bf16 %v570, %v566
    %v796 = vpack.c.bf16 %v578, %v574
    %v797 = vpack.c.bf16 %v580, %v576
    %v798 = vpack.c.bf16 %v588, %v584
    %v799 = vpack.c.bf16 %v590, %v586
    %v800 = vpack.c.bf16 %v598, %v594
    %v801 = vpack.c.bf16 %v600, %v596
    %v802 = vpack.c.bf16 %v608, %v604
    %v803 = vpack.c.bf16 %v610, %v606
    %v804 = vpack.c.bf16 %v618, %v614
    %v805 = vpack.c.bf16 %v620, %v616
    %v806 = vpack.c.bf16 %v628, %v624
    %v807 = vpack.c.bf16 %v630, %v626
    %v808 = vpack.c.bf16 %v638, %v634
    %v809 = vpack.c.bf16 %v640, %v636
    %v810 = vpack.c.bf16 %v648, %v644
    %v811 = vpack.c.bf16 %v650, %v646
    %v812 = vpack.c.bf16 %v658, %v654
    %v813 = vpack.c.bf16 %v660, %v656
    %v814 = vpack.c.bf16 %v668, %v664
    %v815 = vpack.c.bf16 %v670, %v666
    %v816 = vpack.c.bf16 %v678, %v674
    %v817 = vpack.c.bf16 %v680, %v676
    %v818 = vpack.c.bf16 %v688, %v684
    %v819 = vpack.c.bf16 %v690, %v686
    %v820 = vpack.c.bf16 %v698, %v694
    %v821 = vpack.c.bf16 %v700, %v696
    %v822 = vpack.c.bf16 %v708, %v704
    %v823 = vpack.c.bf16 %v710, %v706
    %v824 = vpack.c.bf16 %v718, %v714
    %v825 = vpack.c.bf16 %v720, %v716
    %v826 = vpack.c.bf16 %v728, %v724
    %v827 = vpack.c.bf16 %v730, %v726
    %v828 = vpack.c.bf16 %v738, %v734
    %v829 = vpack.c.bf16 %v740, %v736
    %v830 = vpack.c.bf16 %v748, %v744
    %v831 = vpack.c.bf16 %v750, %v746
    %v832 = vpack.c.bf16 %v758, %v754
    %v833 = vpack.c.bf16 %v760, %v756
    %v834 = vpack.c.bf16 %v768, %v764
    %v835 = vpack.c.bf16 %v770, %v766
    %v836 = vpack.c.bf16 %v778, %v774
    %v837 = vpack.c.bf16 %v780, %v776
    %838 = vst [vmem:[#allocation2] sm:$0xff] %v782
    %839 = vst [vmem:[#allocation2 + $0x8] sm:$0xff] %v783
    %840 = vst [vmem:[#allocation2 + $0x10] sm:$0xff] %v784
    %841 = vst [vmem:[#allocation2 + $0x18] sm:$0xff] %v785
    %842 = vst [vmem:[#allocation2 + $0x20] sm:$0xff] %v786
    %843 = vst [vmem:[#allocation2 + $0x28] sm:$0xff] %v787
    %844 = vst [vmem:[#allocation2 + $0x30] sm:$0xff] %v788
    %845 = vst [vmem:[#allocation2 + $0x38] sm:$0xff] %v789
    %846 = vst [vmem:[#allocation2 + $0x40] sm:$0xff] %v790
    %847 = vst [vmem:[#allocation2 + $0x48] sm:$0xff] %v791
    %848 = vst [vmem:[#allocation2 + $0x50] sm:$0xff] %v792
    %849 = vst [vmem:[#allocation2 + $0x58] sm:$0xff] %v793
    %850 = vst [vmem:[#allocation2 + $0x60] sm:$0xff] %v794
    %851 = vst [vmem:[#allocation2 + $0x68] sm:$0xff] %v795
    %852 = vst [vmem:[#allocation2 + $0x70] sm:$0xff] %v796
    %853 = vst [vmem:[#allocation2 + $0x78] sm:$0xff] %v797
    %854 = vst [vmem:[#allocation2 + $0x80] sm:$0xff] %v798
    %855 = vst [vmem:[#allocation2 + $0x88] sm:$0xff] %v799
    %856 = vst [vmem:[#allocation2 + $0x90] sm:$0xff] %v800
    %857 = vst [vmem:[#allocation2 + $0x98] sm:$0xff] %v801
    %858 = vst [vmem:[#allocation2 + $0xa0] sm:$0xff] %v802
    %859 = vst [vmem:[#allocation2 + $0xa8] sm:$0xff] %v803
    %860 = vst [vmem:[#allocation2 + $0xb0] sm:$0xff] %v804
    %861 = vst [vmem:[#allocation2 + $0xb8] sm:$0xff] %v805
    %862 = vst [vmem:[#allocation2 + $0xc0] sm:$0xff] %v806
    %863 = vst [vmem:[#allocation2 + $0xc8] sm:$0xff] %v807
    %864 = vst [vmem:[#allocation2 + $0xd0] sm:$0xff] %v808
    %865 = vst [vmem:[#allocation2 + $0xd8] sm:$0xff] %v809
    %866 = vst [vmem:[#allocation2 + $0xe0] sm:$0xff] %v810
    %867 = vst [vmem:[#allocation2 + $0xe8] sm:$0xff] %v811
    %868 = vst [vmem:[#allocation2 + $0xf0] sm:$0xff] %v812
    %869 = vst [vmem:[#allocation2 + $0xf8] sm:$0xff] %v813
    %870 = vst [vmem:[#allocation2 + $0x100] sm:$0xff] %v814
    %871 = vst [vmem:[#allocation2 + $0x108] sm:$0xff] %v815
    %872 = vst [vmem:[#allocation2 + $0x110] sm:$0xff] %v816
    %873 = vst [vmem:[#allocation2 + $0x118] sm:$0xff] %v817
    %874 = vst [vmem:[#allocation2 + $0x120] sm:$0xff] %v818
    %875 = vst [vmem:[#allocation2 + $0x128] sm:$0xff] %v819
    %876 = vst [vmem:[#allocation2 + $0x130] sm:$0xff] %v820
    %877 = vst [vmem:[#allocation2 + $0x138] sm:$0xff] %v821
    %878 = vst [vmem:[#allocation2 + $0x140] sm:$0xff] %v822
    %879 = vst [vmem:[#allocation2 + $0x148] sm:$0xff] %v823
    %880 = vst [vmem:[#allocation2 + $0x150] sm:$0xff] %v824
    %881 = vst [vmem:[#allocation2 + $0x158] sm:$0xff] %v825
    %882 = vst [vmem:[#allocation2 + $0x160] sm:$0xff] %v826
    %883 = vst [vmem:[#allocation2 + $0x168] sm:$0xff] %v827
    %884 = vst [vmem:[#allocation2 + $0x170] sm:$0xff] %v828
    %885 = vst [vmem:[#allocation2 + $0x178] sm:$0xff] %v829
    %886 = vst [vmem:[#allocation2 + $0x180] sm:$0xff] %v830
    %887 = vst [vmem:[#allocation2 + $0x188] sm:$0xff] %v831
    %888 = vst [vmem:[#allocation2 + $0x190] sm:$0xff] %v832
    %889 = vst [vmem:[#allocation2 + $0x198] sm:$0xff] %v833
    %890 = vst [vmem:[#allocation2 + $0x1a0] sm:$0xff] %v834
    %891 = vst [vmem:[#allocation2 + $0x1a8] sm:$0xff] %v835
    %892 = vst [vmem:[#allocation2 + $0x1b0] sm:$0xff] %v836
    %893 = vst [vmem:[#allocation2 + $0x1b8] sm:$0xff] %v837
    %v894 = vld [vmem:[#allocation2] sm:$0xff]
    %v895 = vld [vmem:[#allocation2 + $0x8] sm:$0xff]
    %v896 = vld [vmem:[#allocation2 + $0x10] sm:$0xff]
    %v897 = vld [vmem:[#allocation2 + $0x18] sm:$0xff]
    %v898 = vld [vmem:[#allocation2 + $0x20] sm:$0xff]
    %v899 = vld [vmem:[#allocation2 + $0x28] sm:$0xff]
    %v900 = vld [vmem:[#allocation2 + $0x30] sm:$0xff]
    %v901 = vld [vmem:[#allocation2 + $0x38] sm:$0xff]
    %v902 = vld [vmem:[#allocation2 + $0x40] sm:$0xff]
    %v903 = vld [vmem:[#allocation2 + $0x48] sm:$0xff]
    %v904 = vld [vmem:[#allocation2 + $0x50] sm:$0xff]
    %v905 = vld [vmem:[#allocation2 + $0x58] sm:$0xff]
    %v906 = vld [vmem:[#allocation2 + $0x60] sm:$0xff]
    %v907 = vld [vmem:[#allocation2 + $0x68] sm:$0xff]
    %v908 = vld [vmem:[#allocation2 + $0x70] sm:$0xff]
    %v909 = vld [vmem:[#allocation2 + $0x78] sm:$0xff]
    %v910 = vld [vmem:[#allocation2 + $0x80] sm:$0xff]
    %v911 = vld [vmem:[#allocation2 + $0x88] sm:$0xff]
    %v912 = vld [vmem:[#allocation2 + $0x90] sm:$0xff]
    %v913 = vld [vmem:[#allocation2 + $0x98] sm:$0xff]
    %v914 = vld [vmem:[#allocation2 + $0xa0] sm:$0xff]
    %v915 = vld [vmem:[#allocation2 + $0xa8] sm:$0xff]
    %v916 = vld [vmem:[#allocation2 + $0xb0] sm:$0xff]
    %v917 = vld [vmem:[#allocation2 + $0xb8] sm:$0xff]
    %v918 = vld [vmem:[#allocation2 + $0xc0] sm:$0xff]
    %v919 = vld [vmem:[#allocation2 + $0xc8] sm:$0xff]
    %v920 = vld [vmem:[#allocation2 + $0xd0] sm:$0xff]
    %v921 = vld [vmem:[#allocation2 + $0xd8] sm:$0xff]
    %v922 = vld [vmem:[#allocation2 + $0xe0] sm:$0xff]
    %v923 = vld [vmem:[#allocation2 + $0xe8] sm:$0xff]
    %v924 = vld [vmem:[#allocation2 + $0xf0] sm:$0xff]
    %v925 = vld [vmem:[#allocation2 + $0xf8] sm:$0xff]
    %v926 = vld [vmem:[#allocation2 + $0x100] sm:$0xff]
    %v927 = vld [vmem:[#allocation2 + $0x108] sm:$0xff]
    %v928 = vld [vmem:[#allocation2 + $0x110] sm:$0xff]
    %v929 = vld [vmem:[#allocation2 + $0x118] sm:$0xff]
    %v930 = vld [vmem:[#allocation2 + $0x120] sm:$0xff]
    %v931 = vld [vmem:[#allocation2 + $0x128] sm:$0xff]
    %v932 = vld [vmem:[#allocation2 + $0x130] sm:$0xff]
    %v933 = vld [vmem:[#allocation2 + $0x138] sm:$0xff]
    %v934 = vld [vmem:[#allocation2 + $0x140] sm:$0xff]
    %v935 = vld [vmem:[#allocation2 + $0x148] sm:$0xff]
    %v936 = vld [vmem:[#allocation2 + $0x150] sm:$0xff]
    %v937 = vld [vmem:[#allocation2 + $0x158] sm:$0xff]
    %v938 = vld [vmem:[#allocation2 + $0x160] sm:$0xff]
    %v939 = vld [vmem:[#allocation2 + $0x168] sm:$0xff]
    %v940 = vld [vmem:[#allocation2 + $0x170] sm:$0xff]
    %v941 = vld [vmem:[#allocation2 + $0x178] sm:$0xff]
    %v942 = vld [vmem:[#allocation2 + $0x180] sm:$0xff]
    %v943 = vld [vmem:[#allocation2 + $0x188] sm:$0xff]
    %v944 = vld [vmem:[#allocation2 + $0x190] sm:$0xff]
    %v945 = vld [vmem:[#allocation2 + $0x198] sm:$0xff]
    %v946 = vld [vmem:[#allocation2 + $0x1a0] sm:$0xff]
    %v947 = vld [vmem:[#allocation2 + $0x1a8] sm:$0xff]
    %v948 = vld [vmem:[#allocation2 + $0x1b0] sm:$0xff]
    %v949 = vld [vmem:[#allocation2 + $0x1b8] sm:$0xff]
    %v950 = vld [vmem:[%s3] sm:$0xff]
    %v951 = vld [vmem:[%s3 + $0x8] sm:$0xff]
    %v952 = vld [vmem:[%s3 + $0x10] sm:$0xff]
    %v953 = vld [vmem:[%s3 + $0x18] sm:$0xff]
    %v954 = vld [vmem:[%s3 + $0x20] sm:$0xff]
    %v955 = vld [vmem:[%s3 + $0x28] sm:$0xff]
    %v956 = vld [vmem:[%s3 + $0x30] sm:$0xff]
    %v957 = vld [vmem:[%s3 + $0x38] sm:$0xff]
    %v958 = vld [vmem:[%s3 + $0x40] sm:$0xff]
    %v959 = vld [vmem:[%s3 + $0x48] sm:$0xff]
    %v960 = vld [vmem:[%s3 + $0x50] sm:$0xff]
    %v961 = vld [vmem:[%s3 + $0x58] sm:$0xff]
    %v962 = vld [vmem:[%s3 + $0x60] sm:$0xff]
    %v963 = vld [vmem:[%s3 + $0x68] sm:$0xff]
    %v964 = vld [vmem:[%s3 + $0x70] sm:$0xff]
    %v965 = vld [vmem:[%s3 + $0x78] sm:$0xff]
    %v966 = vld [vmem:[%s3 + $0x80] sm:$0xff]
    %v967 = vld [vmem:[%s3 + $0x88] sm:$0xff]
    %v968 = vld [vmem:[%s3 + $0x90] sm:$0xff]
    %v969 = vld [vmem:[%s3 + $0x98] sm:$0xff]
    %v970 = vld [vmem:[%s3 + $0xa0] sm:$0xff]
    %v971 = vld [vmem:[%s3 + $0xa8] sm:$0xff]
    %v972 = vld [vmem:[%s3 + $0xb0] sm:$0xff]
    %v973 = vld [vmem:[%s3 + $0xb8] sm:$0xff]
    %v974 = vld [vmem:[%s3 + $0xc0] sm:$0xff]
    %v975 = vld [vmem:[%s3 + $0xc8] sm:$0xff]
    %v976 = vld [vmem:[%s3 + $0xd0] sm:$0xff]
    %v977 = vld [vmem:[%s3 + $0xd8] sm:$0xff]
    %v978 = vld [vmem:[%s3 + $0xe0] sm:$0xff]
    %v979 = vld [vmem:[%s3 + $0xe8] sm:$0xff]
    %v980 = vld [vmem:[%s3 + $0xf0] sm:$0xff]
    %v981 = vld [vmem:[%s3 + $0xf8] sm:$0xff]
    %v982 = vld [vmem:[%s4] sm:$0x3]
    %v984 = vlaneseq
    %v985 = vshrl.u32 %v984, 7
    %v986 = vsub.s32 0, %v985
    %v987 = vrot.slane %v982, %v986
    %v988 = vlaneseq
    %v989 = vshrl.u32 %v988, 7
    %v990 = vsub.s32 1, %v989
    %v991 = vrot.slane %v982, %v990
    %v1026 = vunpack.c.l.b16 %v950
    %v1027 = vunpack.c.h.b16 %v950
    %v1028 = vunpack.c.l.b16 %v951
    %v1029 = vunpack.c.h.b16 %v951
    %v1030 = vunpack.c.l.b16 %v952
    %v1031 = vunpack.c.h.b16 %v952
    %v1032 = vunpack.c.l.b16 %v953
    %v1033 = vunpack.c.h.b16 %v953
    %v1034 = vunpack.c.l.b16 %v954
    %v1035 = vunpack.c.h.b16 %v954
    %v1036 = vunpack.c.l.b16 %v955
    %v1037 = vunpack.c.h.b16 %v955
    %v1038 = vunpack.c.l.b16 %v956
    %v1039 = vunpack.c.h.b16 %v956
    %v1040 = vunpack.c.l.b16 %v957
    %v1041 = vunpack.c.h.b16 %v957
    %v1042 = vunpack.c.l.b16 %v958
    %v1043 = vunpack.c.h.b16 %v958
    %v1044 = vunpack.c.l.b16 %v959
    %v1045 = vunpack.c.h.b16 %v959
    %v1046 = vunpack.c.l.b16 %v960
    %v1047 = vunpack.c.h.b16 %v960
    %v1048 = vunpack.c.l.b16 %v961
    %v1049 = vunpack.c.h.b16 %v961
    %v1050 = vunpack.c.l.b16 %v962
    %v1051 = vunpack.c.h.b16 %v962
    %v1052 = vunpack.c.l.b16 %v963
    %v1053 = vunpack.c.h.b16 %v963
    %v1054 = vunpack.c.l.b16 %v964
    %v1055 = vunpack.c.h.b16 %v964
    %v1056 = vunpack.c.l.b16 %v965
    %v1057 = vunpack.c.h.b16 %v965
    %v1058 = vunpack.c.l.b16 %v966
    %v1059 = vunpack.c.h.b16 %v966
    %v1060 = vunpack.c.l.b16 %v967
    %v1061 = vunpack.c.h.b16 %v967
    %v1062 = vunpack.c.l.b16 %v968
    %v1063 = vunpack.c.h.b16 %v968
    %v1064 = vunpack.c.l.b16 %v969
    %v1065 = vunpack.c.h.b16 %v969
    %v1066 = vunpack.c.l.b16 %v970
    %v1067 = vunpack.c.h.b16 %v970
    %v1068 = vunpack.c.l.b16 %v971
    %v1069 = vunpack.c.h.b16 %v971
    %v1070 = vunpack.c.l.b16 %v972
    %v1071 = vunpack.c.h.b16 %v972
    %v1072 = vunpack.c.l.b16 %v973
    %v1073 = vunpack.c.h.b16 %v973
    %v1074 = vunpack.c.l.b16 %v974
    %v1075 = vunpack.c.h.b16 %v974
    %v1076 = vunpack.c.l.b16 %v975
    %v1077 = vunpack.c.h.b16 %v975
    %v1078 = vunpack.c.l.b16 %v976
    %v1079 = vunpack.c.h.b16 %v976
    %v1080 = vunpack.c.l.b16 %v977
    %v1081 = vunpack.c.h.b16 %v977
    %v1082 = vunpack.c.l.b16 %v978
    %v1083 = vunpack.c.h.b16 %v978
    %v1084 = vunpack.c.l.b16 %v979
    %v1085 = vunpack.c.h.b16 %v979
    %v1086 = vunpack.c.l.b16 %v980
    %v1087 = vunpack.c.h.b16 %v980
    %v1088 = vunpack.c.l.b16 %v981
    %v1089 = vunpack.c.h.b16 %v981
    %v1090 = vpack.c.b16 %v1028, %v1026
    %v1091 = vpack.c.b16 %v1029, %v1027
    %v1092 = vpack.c.b16 %v1032, %v1030
    %v1093 = vpack.c.b16 %v1033, %v1031
    %v1094 = vpack.c.b16 %v1036, %v1034
    %v1095 = vpack.c.b16 %v1037, %v1035
    %v1096 = vpack.c.b16 %v1040, %v1038
    %v1097 = vpack.c.b16 %v1041, %v1039
    %v1098 = vpack.c.b16 %v1044, %v1042
    %v1099 = vpack.c.b16 %v1045, %v1043
    %v1100 = vpack.c.b16 %v1048, %v1046
    %v1101 = vpack.c.b16 %v1049, %v1047
    %v1102 = vpack.c.b16 %v1052, %v1050
    %v1103 = vpack.c.b16 %v1053, %v1051
    %v1104 = vpack.c.b16 %v1056, %v1054
    %v1105 = vpack.c.b16 %v1057, %v1055
    %v1106 = vpack.c.b16 %v1060, %v1058
    %v1107 = vpack.c.b16 %v1061, %v1059
    %v1108 = vpack.c.b16 %v1064, %v1062
    %v1109 = vpack.c.b16 %v1065, %v1063
    %v1110 = vpack.c.b16 %v1068, %v1066
    %v1111 = vpack.c.b16 %v1069, %v1067
    %v1112 = vpack.c.b16 %v1072, %v1070
    %v1113 = vpack.c.b16 %v1073, %v1071
    %v1114 = vpack.c.b16 %v1076, %v1074
    %v1115 = vpack.c.b16 %v1077, %v1075
    %v1116 = vpack.c.b16 %v1080, %v1078
    %v1117 = vpack.c.b16 %v1081, %v1079
    %v1118 = vpack.c.b16 %v1084, %v1082
    %v1119 = vpack.c.b16 %v1085, %v1083
    %v1120 = vpack.c.b16 %v1088, %v1086
    %v1121 = vpack.c.b16 %v1089, %v1087
    %1154 = vmatprep.subr.bf16.mxu0 %v1091
    %1155 = vmatpush1.bf16.msra.mxu0 %v1090
    %1156 = vmatprep.subr.bf16.mxu0 %v1093
    %1157 = vmatpush1.bf16.msra.mxu0 %v1092
    %1158 = vmatprep.subr.bf16.mxu0 %v1095
    %1159 = vmatpush1.bf16.msra.mxu0 %v1094
    %1160 = vmatprep.subr.bf16.mxu0 %v1097
    %1161 = vmatpush1.bf16.msra.mxu0 %v1096
    %1162 = vmatprep.subr.bf16.mxu0 %v1099
    %1163 = vmatpush1.bf16.msra.mxu0 %v1098
    %1164 = vmatprep.subr.bf16.mxu0 %v1101
    %1165 = vmatpush1.bf16.msra.mxu0 %v1100
    %1166 = vmatprep.subr.bf16.mxu0 %v1103
    %1167 = vmatpush1.bf16.msra.mxu0 %v1102
    %1168 = vmatprep.subr.bf16.mxu0 %v1105
    %1169 = vmatpush1.bf16.msra.mxu0 %v1104
    %1170 = vmatprep.subr.bf16.mxu0 %v1107
    %1171 = vmatpush1.bf16.msra.mxu0 %v1106
    %1172 = vmatprep.subr.bf16.mxu0 %v1109
    %1173 = vmatpush1.bf16.msra.mxu0 %v1108
    %1174 = vmatprep.subr.bf16.mxu0 %v1111
    %1175 = vmatpush1.bf16.msra.mxu0 %v1110
    %1176 = vmatprep.subr.bf16.mxu0 %v1113
    %1177 = vmatpush1.bf16.msra.mxu0 %v1112
    %1178 = vmatprep.subr.bf16.mxu0 %v1115
    %1179 = vmatpush1.bf16.msra.mxu0 %v1114
    %1180 = vmatprep.subr.bf16.mxu0 %v1117
    %1181 = vmatpush1.bf16.msra.mxu0 %v1116
    %1182 = vmatprep.subr.bf16.mxu0 %v1119
    %1183 = vmatpush1.bf16.msra.mxu0 %v1118
    %1184 = vmatprep.subr.bf16.mxu0 %v1121
    %1185 = vmatpush1.bf16.msra.mxu0 %v1120
    %1186 = vmatprep.mubr.bf16.mxu0 %v895
    %1187 = vmatmul.mubr.bf16.gmra.mrb[0].mxu0 %v894
    %v1188 = vpop.f32.mrb[0].mxu0
    %v1189 = vadd.f32 %v987, %v1188
    %v1190 = vpop.f32.mrb[0].mxu0
    %v1191 = vadd.f32 %v991, %v1190
    %v1192 = vpop.f32.mrb[0].mxu0
    %v1193 = vadd.f32 %v987, %v1192
    %v1194 = vpop.f32.mrb[0].mxu0
    %v1195 = vadd.f32 %v991, %v1194
    %1196 = vmatprep.mubr.bf16.mxu0 %v897
    %1197 = vmatmul.mubr.bf16.gmra.mrb[0].mxu0 %v896
    %v1198 = vpop.f32.mrb[0].mxu0
    %v1199 = vadd.f32 %v987, %v1198
    %v1200 = vpop.f32.mrb[0].mxu0
    %v1201 = vadd.f32 %v991, %v1200
    %v1202 = vpop.f32.mrb[0].mxu0
    %v1203 = vadd.f32 %v987, %v1202
    %v1204 = vpop.f32.mrb[0].mxu0
    %v1205 = vadd.f32 %v991, %v1204
    %1206 = vmatprep.mubr.bf16.mxu0 %v899
    %1207 = vmatmul.mubr.bf16.gmra.mrb[0].mxu0 %v898
    %v1208 = vpop.f32.mrb[0].mxu0
    %v1209 = vadd.f32 %v987, %v1208
    %v1210 = vpop.f32.mrb[0].mxu0
    %v1211 = vadd.f32 %v991, %v1210
    %v1212 = vpop.f32.mrb[0].mxu0
    %v1213 = vadd.f32 %v987, %v1212
    %v1214 = vpop.f32.mrb[0].mxu0
    %v1215 = vadd.f32 %v991, %v1214
    %1216 = vmatprep.mubr.bf16.mxu0 %v901
    %1217 = vmatmul.mubr.bf16.gmra.mrb[0].mxu0 %v900
    %v1218 = vpop.f32.mrb[0].mxu0
    %v1219 = vadd.f32 %v987, %v1218
    %v1220 = vpop.f32.mrb[0].mxu0
    %v1221 = vadd.f32 %v991, %v1220
    %v1222 = vpop.f32.mrb[0].mxu0
    %v1223 = vadd.f32 %v987, %v1222
    %v1224 = vpop.f32.mrb[0].mxu0
    %v1225 = vadd.f32 %v991, %v1224
    %1226 = vmatprep.mubr.bf16.mxu0 %v903
    %1227 = vmatmul.mubr.bf16.gmra.mrb[0].mxu0 %v902
    %v1228 = vpop.f32.mrb[0].mxu0
    %v1229 = vadd.f32 %v987, %v1228
    %v1230 = vpop.f32.mrb[0].mxu0
    %v1231 = vadd.f32 %v991, %v1230
    %v1232 = vpop.f32.mrb[0].mxu0
    %v1233 = vadd.f32 %v987, %v1232
    %v1234 = vpop.f32.mrb[0].mxu0
    %v1235 = vadd.f32 %v991, %v1234
    %1236 = vmatprep.mubr.bf16.mxu0 %v905
    %1237 = vmatmul.mubr.bf16.gmra.mrb[0].mxu0 %v904
    %v1238 = vpop.f32.mrb[0].mxu0
    %v1239 = vadd.f32 %v987, %v1238
    %v1240 = vpop.f32.mrb[0].mxu0
    %v1241 = vadd.f32 %v991, %v1240
    %v1242 = vpop.f32.mrb[0].mxu0
    %v1243 = vadd.f32 %v987, %v1242
    %v1244 = vpop.f32.mrb[0].mxu0
    %v1245 = vadd.f32 %v991, %v1244
    %1246 = vmatprep.mubr.bf16.mxu0 %v907
    %1247 = vmatmul.mubr.bf16.gmra.mrb[0].mxu0 %v906
    %v1248 = vpop.f32.mrb[0].mxu0
    %v1249 = vadd.f32 %v987, %v1248
    %v1250 = vpop.f32.mrb[0].mxu0
    %v1251 = vadd.f32 %v991, %v1250
    %v1252 = vpop.f32.mrb[0].mxu0
    %v1253 = vadd.f32 %v987, %v1252
    %v1254 = vpop.f32.mrb[0].mxu0
    %v1255 = vadd.f32 %v991, %v1254
    %1256 = vmatprep.mubr.bf16.mxu0 %v909
    %1257 = vmatmul.mubr.bf16.gmra.mrb[0].mxu0 %v908
    %v1258 = vpop.f32.mrb[0].mxu0
    %v1259 = vadd.f32 %v987, %v1258
    %v1260 = vpop.f32.mrb[0].mxu0
    %v1261 = vadd.f32 %v991, %v1260
    %v1262 = vpop.f32.mrb[0].mxu0
    %v1263 = vadd.f32 %v987, %v1262
    %v1264 = vpop.f32.mrb[0].mxu0
    %v1265 = vadd.f32 %v991, %v1264
    %1266 = vmatprep.mubr.bf16.mxu0 %v911
    %1267 = vmatmul.mubr.bf16.gmra.mrb[0].mxu0 %v910
    %v1268 = vpop.f32.mrb[0].mxu0
    %v1269 = vadd.f32 %v987, %v1268
    %v1270 = vpop.f32.mrb[0].mxu0
    %v1271 = vadd.f32 %v991, %v1270
    %v1272 = vpop.f32.mrb[0].mxu0
    %v1273 = vadd.f32 %v987, %v1272
    %v1274 = vpop.f32.mrb[0].mxu0
    %v1275 = vadd.f32 %v991, %v1274
    %1276 = vmatprep.mubr.bf16.mxu0 %v913
    %1277 = vmatmul.mubr.bf16.gmra.mrb[0].mxu0 %v912
    %v1278 = vpop.f32.mrb[0].mxu0
    %v1279 = vadd.f32 %v987, %v1278
    %v1280 = vpop.f32.mrb[0].mxu0
    %v1281 = vadd.f32 %v991, %v1280
    %v1282 = vpop.f32.mrb[0].mxu0
    %v1283 = vadd.f32 %v987, %v1282
    %v1284 = vpop.f32.mrb[0].mxu0
    %v1285 = vadd.f32 %v991, %v1284
    %1286 = vmatprep.mubr.bf16.mxu0 %v915
    %1287 = vmatmul.mubr.bf16.gmra.mrb[0].mxu0 %v914
    %v1288 = vpop.f32.mrb[0].mxu0
    %v1289 = vadd.f32 %v987, %v1288
    %v1290 = vpop.f32.mrb[0].mxu0
    %v1291 = vadd.f32 %v991, %v1290
    %v1292 = vpop.f32.mrb[0].mxu0
    %v1293 = vadd.f32 %v987, %v1292
    %v1294 = vpop.f32.mrb[0].mxu0
    %v1295 = vadd.f32 %v991, %v1294
    %1296 = vmatprep.mubr.bf16.mxu0 %v917
    %1297 = vmatmul.mubr.bf16.gmra.mrb[0].mxu0 %v916
    %v1298 = vpop.f32.mrb[0].mxu0
    %v1299 = vadd.f32 %v987, %v1298
    %v1300 = vpop.f32.mrb[0].mxu0
    %v1301 = vadd.f32 %v991, %v1300
    %v1302 = vpop.f32.mrb[0].mxu0
    %v1303 = vadd.f32 %v987, %v1302
    %v1304 = vpop.f32.mrb[0].mxu0
    %v1305 = vadd.f32 %v991, %v1304
    %1306 = vmatprep.mubr.bf16.mxu0 %v919
    %1307 = vmatmul.mubr.bf16.gmra.mrb[0].mxu0 %v918
    %v1308 = vpop.f32.mrb[0].mxu0
    %v1309 = vadd.f32 %v987, %v1308
    %v1310 = vpop.f32.mrb[0].mxu0
    %v1311 = vadd.f32 %v991, %v1310
    %v1312 = vpop.f32.mrb[0].mxu0
    %v1313 = vadd.f32 %v987, %v1312
    %v1314 = vpop.f32.mrb[0].mxu0
    %v1315 = vadd.f32 %v991, %v1314
    %1316 = vmatprep.mubr.bf16.mxu0 %v921
    %1317 = vmatmul.mubr.bf16.gmra.mrb[0].mxu0 %v920
    %v1318 = vpop.f32.mrb[0].mxu0
    %v1319 = vadd.f32 %v987, %v1318
    %v1320 = vpop.f32.mrb[0].mxu0
    %v1321 = vadd.f32 %v991, %v1320
    %v1322 = vpop.f32.mrb[0].mxu0
    %v1323 = vadd.f32 %v987, %v1322
    %v1324 = vpop.f32.mrb[0].mxu0
    %v1325 = vadd.f32 %v991, %v1324
    %1326 = vmatprep.mubr.bf16.mxu0 %v923
    %1327 = vmatmul.mubr.bf16.gmra.mrb[0].mxu0 %v922
    %v1328 = vpop.f32.mrb[0].mxu0
    %v1329 = vadd.f32 %v987, %v1328
    %v1330 = vpop.f32.mrb[0].mxu0
    %v1331 = vadd.f32 %v991, %v1330
    %v1332 = vpop.f32.mrb[0].mxu0
    %v1333 = vadd.f32 %v987, %v1332
    %v1334 = vpop.f32.mrb[0].mxu0
    %v1335 = vadd.f32 %v991, %v1334
    %1336 = vmatprep.mubr.bf16.mxu0 %v925
    %1337 = vmatmul.mubr.bf16.gmra.mrb[0].mxu0 %v924
    %v1338 = vpop.f32.mrb[0].mxu0
    %v1339 = vadd.f32 %v987, %v1338
    %v1340 = vpop.f32.mrb[0].mxu0
    %v1341 = vadd.f32 %v991, %v1340
    %v1342 = vpop.f32.mrb[0].mxu0
    %v1343 = vadd.f32 %v987, %v1342
    %v1344 = vpop.f32.mrb[0].mxu0
    %v1345 = vadd.f32 %v991, %v1344
    %1346 = vmatprep.mubr.bf16.mxu0 %v927
    %1347 = vmatmul.mubr.bf16.gmra.mrb[0].mxu0 %v926
    %v1348 = vpop.f32.mrb[0].mxu0
    %v1349 = vadd.f32 %v987, %v1348
    %v1350 = vpop.f32.mrb[0].mxu0
    %v1351 = vadd.f32 %v991, %v1350
    %v1352 = vpop.f32.mrb[0].mxu0
    %v1353 = vadd.f32 %v987, %v1352
    %v1354 = vpop.f32.mrb[0].mxu0
    %v1355 = vadd.f32 %v991, %v1354
    %1356 = vmatprep.mubr.bf16.mxu0 %v929
    %1357 = vmatmul.mubr.bf16.gmra.mrb[0].mxu0 %v928
    %v1358 = vpop.f32.mrb[0].mxu0
    %v1359 = vadd.f32 %v987, %v1358
    %v1360 = vpop.f32.mrb[0].mxu0
    %v1361 = vadd.f32 %v991, %v1360
    %v1362 = vpop.f32.mrb[0].mxu0
    %v1363 = vadd.f32 %v987, %v1362
    %v1364 = vpop.f32.mrb[0].mxu0
    %v1365 = vadd.f32 %v991, %v1364
    %1366 = vmatprep.mubr.bf16.mxu0 %v931
    %1367 = vmatmul.mubr.bf16.gmra.mrb[0].mxu0 %v930
    %v1368 = vpop.f32.mrb[0].mxu0
    %v1369 = vadd.f32 %v987, %v1368
    %v1370 = vpop.f32.mrb[0].mxu0
    %v1371 = vadd.f32 %v991, %v1370
    %v1372 = vpop.f32.mrb[0].mxu0
    %v1373 = vadd.f32 %v987, %v1372
    %v1374 = vpop.f32.mrb[0].mxu0
    %v1375 = vadd.f32 %v991, %v1374
    %1376 = vmatprep.mubr.bf16.mxu0 %v933
    %1377 = vmatmul.mubr.bf16.gmra.mrb[0].mxu0 %v932
    %v1378 = vpop.f32.mrb[0].mxu0
    %v1379 = vadd.f32 %v987, %v1378
    %v1380 = vpop.f32.mrb[0].mxu0
    %v1381 = vadd.f32 %v991, %v1380
    %v1382 = vpop.f32.mrb[0].mxu0
    %v1383 = vadd.f32 %v987, %v1382
    %v1384 = vpop.f32.mrb[0].mxu0
    %v1385 = vadd.f32 %v991, %v1384
    %1386 = vmatprep.mubr.bf16.mxu0 %v935
    %1387 = vmatmul.mubr.bf16.gmra.mrb[0].mxu0 %v934
    %v1388 = vpop.f32.mrb[0].mxu0
    %v1389 = vadd.f32 %v987, %v1388
    %v1390 = vpop.f32.mrb[0].mxu0
    %v1391 = vadd.f32 %v991, %v1390
    %v1392 = vpop.f32.mrb[0].mxu0
    %v1393 = vadd.f32 %v987, %v1392
    %v1394 = vpop.f32.mrb[0].mxu0
    %v1395 = vadd.f32 %v991, %v1394
    %1396 = vmatprep.mubr.bf16.mxu0 %v937
    %1397 = vmatmul.mubr.bf16.gmra.mrb[0].mxu0 %v936
    %v1398 = vpop.f32.mrb[0].mxu0
    %v1399 = vadd.f32 %v987, %v1398
    %v1400 = vpop.f32.mrb[0].mxu0
    %v1401 = vadd.f32 %v991, %v1400
    %v1402 = vpop.f32.mrb[0].mxu0
    %v1403 = vadd.f32 %v987, %v1402
    %v1404 = vpop.f32.mrb[0].mxu0
    %v1405 = vadd.f32 %v991, %v1404
    %1406 = vmatprep.mubr.bf16.mxu0 %v939
    %1407 = vmatmul.mubr.bf16.gmra.mrb[0].mxu0 %v938
    %v1408 = vpop.f32.mrb[0].mxu0
    %v1409 = vadd.f32 %v987, %v1408
    %v1410 = vpop.f32.mrb[0].mxu0
    %v1411 = vadd.f32 %v991, %v1410
    %v1412 = vpop.f32.mrb[0].mxu0
    %v1413 = vadd.f32 %v987, %v1412
    %v1414 = vpop.f32.mrb[0].mxu0
    %v1415 = vadd.f32 %v991, %v1414
    %1416 = vmatprep.mubr.bf16.mxu0 %v941
    %1417 = vmatmul.mubr.bf16.gmra.mrb[0].mxu0 %v940
    %v1418 = vpop.f32.mrb[0].mxu0
    %v1419 = vadd.f32 %v987, %v1418
    %v1420 = vpop.f32.mrb[0].mxu0
    %v1421 = vadd.f32 %v991, %v1420
    %v1422 = vpop.f32.mrb[0].mxu0
    %v1423 = vadd.f32 %v987, %v1422
    %v1424 = vpop.f32.mrb[0].mxu0
    %v1425 = vadd.f32 %v991, %v1424
    %1426 = vmatprep.mubr.bf16.mxu0 %v943
    %1427 = vmatmul.mubr.bf16.gmra.mrb[0].mxu0 %v942
    %v1428 = vpop.f32.mrb[0].mxu0
    %v1429 = vadd.f32 %v987, %v1428
    %v1430 = vpop.f32.mrb[0].mxu0
    %v1431 = vadd.f32 %v991, %v1430
    %v1432 = vpop.f32.mrb[0].mxu0
    %v1433 = vadd.f32 %v987, %v1432
    %v1434 = vpop.f32.mrb[0].mxu0
    %v1435 = vadd.f32 %v991, %v1434
    %1436 = vmatprep.mubr.bf16.mxu0 %v945
    %1437 = vmatmul.mubr.bf16.gmra.mrb[0].mxu0 %v944
    %v1438 = vpop.f32.mrb[0].mxu0
    %v1439 = vadd.f32 %v987, %v1438
    %v1440 = vpop.f32.mrb[0].mxu0
    %v1441 = vadd.f32 %v991, %v1440
    %v1442 = vpop.f32.mrb[0].mxu0
    %v1443 = vadd.f32 %v987, %v1442
    %v1444 = vpop.f32.mrb[0].mxu0
    %v1445 = vadd.f32 %v991, %v1444
    %1446 = vmatprep.mubr.bf16.mxu0 %v947
    %1447 = vmatmul.mubr.bf16.gmra.mrb[0].mxu0 %v946
    %v1448 = vpop.f32.mrb[0].mxu0
    %v1449 = vadd.f32 %v987, %v1448
    %v1450 = vpop.f32.mrb[0].mxu0
    %v1451 = vadd.f32 %v991, %v1450
    %v1452 = vpop.f32.mrb[0].mxu0
    %v1453 = vadd.f32 %v987, %v1452
    %v1454 = vpop.f32.mrb[0].mxu0
    %v1455 = vadd.f32 %v991, %v1454
    %1456 = vmatprep.mubr.bf16.mxu0 %v949
    %1457 = vmatmul.mubr.bf16.gmra.mrb[0].mxu0 %v948
    %v1458 = vpop.f32.mrb[0].mxu0
    %v1459 = vadd.f32 %v987, %v1458
    %v1460 = vpop.f32.mrb[0].mxu0
    %v1461 = vadd.f32 %v991, %v1460
    %v1462 = vpop.f32.mrb[0].mxu0
    %v1463 = vadd.f32 %v987, %v1462
    %v1464 = vpop.f32.mrb[0].mxu0
    %v1465 = vadd.f32 %v991, %v1464
    %1466 = vdwg.mxu0
    %1467 = vst [vmem:[#allocation6] sm:$0xff] %v1189
    %1468 = vst.msk [vmem:[#allocation6 + $0x8] sm:$0xff] %vm384, %v1191
    %1469 = vst [vmem:[#allocation6 + $0x10] sm:$0xff] %v1193
    %1470 = vst.msk [vmem:[#allocation6 + $0x18] sm:$0xff] %vm384, %v1195
    %1471 = vst [vmem:[#allocation6 + $0x20] sm:$0xff] %v1199
    %1472 = vst.msk [vmem:[#allocation6 + $0x28] sm:$0xff] %vm384, %v1201
    %1473 = vst [vmem:[#allocation6 + $0x30] sm:$0xff] %v1203
    %1474 = vst.msk [vmem:[#allocation6 + $0x38] sm:$0xff] %vm384, %v1205
    %1475 = vst [vmem:[#allocation6 + $0x40] sm:$0xff] %v1209
    %1476 = vst.msk [vmem:[#allocation6 + $0x48] sm:$0xff] %vm384, %v1211
    %1477 = vst [vmem:[#allocation6 + $0x50] sm:$0xff] %v1213
    %1478 = vst.msk [vmem:[#allocation6 + $0x58] sm:$0xff] %vm384, %v1215
    %1479 = vst [vmem:[#allocation6 + $0x60] sm:$0xff] %v1219
    %1480 = vst.msk [vmem:[#allocation6 + $0x68] sm:$0xff] %vm384, %v1221
    %1481 = vst [vmem:[#allocation6 + $0x70] sm:$0xff] %v1223
    %1482 = vst.msk [vmem:[#allocation6 + $0x78] sm:$0xff] %vm384, %v1225
    %1483 = vst [vmem:[#allocation6 + $0x80] sm:$0xff] %v1229
    %1484 = vst.msk [vmem:[#allocation6 + $0x88] sm:$0xff] %vm384, %v1231
    %1485 = vst [vmem:[#allocation6 + $0x90] sm:$0xff] %v1233
    %1486 = vst.msk [vmem:[#allocation6 + $0x98] sm:$0xff] %vm384, %v1235
    %1487 = vst [vmem:[#allocation6 + $0xa0] sm:$0xff] %v1239
    %1488 = vst.msk [vmem:[#allocation6 + $0xa8] sm:$0xff] %vm384, %v1241
    %1489 = vst [vmem:[#allocation6 + $0xb0] sm:$0xff] %v1243
    %1490 = vst.msk [vmem:[#allocation6 + $0xb8] sm:$0xff] %vm384, %v1245
    %1491 = vst [vmem:[#allocation6 + $0xc0] sm:$0xff] %v1249
    %1492 = vst.msk [vmem:[#allocation6 + $0xc8] sm:$0xff] %vm384, %v1251
    %1493 = vst [vmem:[#allocation6 + $0xd0] sm:$0xff] %v1253
    %1494 = vst.msk [vmem:[#allocation6 + $0xd8] sm:$0xff] %vm384, %v1255
    %1495 = vst [vmem:[#allocation6 + $0xe0] sm:$0xff] %v1259
    %1496 = vst.msk [vmem:[#allocation6 + $0xe8] sm:$0xff] %vm384, %v1261
    %1497 = vst [vmem:[#allocation6 + $0xf0] sm:$0xff] %v1263
    %1498 = vst.msk [vmem:[#allocation6 + $0xf8] sm:$0xff] %vm384, %v1265
    %1499 = vst [vmem:[#allocation6 + $0x100] sm:$0xff] %v1269
    %1500 = vst.msk [vmem:[#allocation6 + $0x108] sm:$0xff] %vm384, %v1271
    %1501 = vst [vmem:[#allocation6 + $0x110] sm:$0xff] %v1273
    %1502 = vst.msk [vmem:[#allocation6 + $0x118] sm:$0xff] %vm384, %v1275
    %1503 = vst [vmem:[#allocation6 + $0x120] sm:$0xff] %v1279
    %1504 = vst.msk [vmem:[#allocation6 + $0x128] sm:$0xff] %vm384, %v1281
    %1505 = vst [vmem:[#allocation6 + $0x130] sm:$0xff] %v1283
    %1506 = vst.msk [vmem:[#allocation6 + $0x138] sm:$0xff] %vm384, %v1285
    %1507 = vst [vmem:[#allocation6 + $0x140] sm:$0xff] %v1289
    %1508 = vst.msk [vmem:[#allocation6 + $0x148] sm:$0xff] %vm384, %v1291
    %1509 = vst [vmem:[#allocation6 + $0x150] sm:$0xff] %v1293
    %1510 = vst.msk [vmem:[#allocation6 + $0x158] sm:$0xff] %vm384, %v1295
    %1511 = vst [vmem:[#allocation6 + $0x160] sm:$0xff] %v1299
    %1512 = vst.msk [vmem:[#allocation6 + $0x168] sm:$0xff] %vm384, %v1301
    %1513 = vst [vmem:[#allocation6 + $0x170] sm:$0xff] %v1303
    %1514 = vst.msk [vmem:[#allocation6 + $0x178] sm:$0xff] %vm384, %v1305
    %1515 = vst [vmem:[#allocation6 + $0x180] sm:$0xff] %v1309
    %1516 = vst.msk [vmem:[#allocation6 + $0x188] sm:$0xff] %vm384, %v1311
    %1517 = vst [vmem:[#allocation6 + $0x190] sm:$0xff] %v1313
    %1518 = vst.msk [vmem:[#allocation6 + $0x198] sm:$0xff] %vm384, %v1315
    %1519 = vst [vmem:[#allocation6 + $0x1a0] sm:$0xff] %v1319
    %1520 = vst.msk [vmem:[#allocation6 + $0x1a8] sm:$0xff] %vm384, %v1321
    %1521 = vst [vmem:[#allocation6 + $0x1b0] sm:$0xff] %v1323
    %1522 = vst.msk [vmem:[#allocation6 + $0x1b8] sm:$0xff] %vm384, %v1325
    %1523 = vst [vmem:[#allocation6 + $0x1c0] sm:$0xff] %v1329
    %1524 = vst.msk [vmem:[#allocation6 + $0x1c8] sm:$0xff] %vm384, %v1331
    %1525 = vst [vmem:[#allocation6 + $0x1d0] sm:$0xff] %v1333
    %1526 = vst.msk [vmem:[#allocation6 + $0x1d8] sm:$0xff] %vm384, %v1335
    %1527 = vst [vmem:[#allocation6 + $0x1e0] sm:$0xff] %v1339
    %1528 = vst.msk [vmem:[#allocation6 + $0x1e8] sm:$0xff] %vm384, %v1341
    %1529 = vst [vmem:[#allocation6 + $0x1f0] sm:$0xff] %v1343
    %1530 = vst.msk [vmem:[#allocation6 + $0x1f8] sm:$0xff] %vm384, %v1345
    %1531 = vst [vmem:[#allocation6 + $0x200] sm:$0xff] %v1349
    %1532 = vst.msk [vmem:[#allocation6 + $0x208] sm:$0xff] %vm384, %v1351
    %1533 = vst [vmem:[#allocation6 + $0x210] sm:$0xff] %v1353
    %1534 = vst.msk [vmem:[#allocation6 + $0x218] sm:$0xff] %vm384, %v1355
    %1535 = vst [vmem:[#allocation6 + $0x220] sm:$0xff] %v1359
    %1536 = vst.msk [vmem:[#allocation6 + $0x228] sm:$0xff] %vm384, %v1361
    %1537 = vst [vmem:[#allocation6 + $0x230] sm:$0xff] %v1363
    %1538 = vst.msk [vmem:[#allocation6 + $0x238] sm:$0xff] %vm384, %v1365
    %1539 = vst [vmem:[#allocation6 + $0x240] sm:$0xff] %v1369
    %1540 = vst.msk [vmem:[#allocation6 + $0x248] sm:$0xff] %vm384, %v1371
    %1541 = vst [vmem:[#allocation6 + $0x250] sm:$0xff] %v1373
    %1542 = vst.msk [vmem:[#allocation6 + $0x258] sm:$0xff] %vm384, %v1375
    %1543 = vst [vmem:[#allocation6 + $0x260] sm:$0xff] %v1379
    %1544 = vst.msk [vmem:[#allocation6 + $0x268] sm:$0xff] %vm384, %v1381
    %1545 = vst [vmem:[#allocation6 + $0x270] sm:$0xff] %v1383
    %1546 = vst.msk [vmem:[#allocation6 + $0x278] sm:$0xff] %vm384, %v1385
    %1547 = vst [vmem:[#allocation6 + $0x280] sm:$0xff] %v1389
    %1548 = vst.msk [vmem:[#allocation6 + $0x288] sm:$0xff] %vm384, %v1391
    %1549 = vst [vmem:[#allocation6 + $0x290] sm:$0xff] %v1393
    %1550 = vst.msk [vmem:[#allocation6 + $0x298] sm:$0xff] %vm384, %v1395
    %1551 = vst [vmem:[#allocation6 + $0x2a0] sm:$0xff] %v1399
    %1552 = vst.msk [vmem:[#allocation6 + $0x2a8] sm:$0xff] %vm384, %v1401
    %1553 = vst [vmem:[#allocation6 + $0x2b0] sm:$0xff] %v1403
    %1554 = vst.msk [vmem:[#allocation6 + $0x2b8] sm:$0xff] %vm384, %v1405
    %1555 = vst [vmem:[#allocation6 + $0x2c0] sm:$0xff] %v1409
    %1556 = vst.msk [vmem:[#allocation6 + $0x2c8] sm:$0xff] %vm384, %v1411
    %1557 = vst [vmem:[#allocation6 + $0x2d0] sm:$0xff] %v1413
    %1558 = vst.msk [vmem:[#allocation6 + $0x2d8] sm:$0xff] %vm384, %v1415
    %1559 = vst [vmem:[#allocation6 + $0x2e0] sm:$0xff] %v1419
    %1560 = vst.msk [vmem:[#allocation6 + $0x2e8] sm:$0xff] %vm384, %v1421
    %1561 = vst [vmem:[#allocation6 + $0x2f0] sm:$0xff] %v1423
    %1562 = vst.msk [vmem:[#allocation6 + $0x2f8] sm:$0xff] %vm384, %v1425
    %1563 = vst [vmem:[#allocation6 + $0x300] sm:$0xff] %v1429
    %1564 = vst.msk [vmem:[#allocation6 + $0x308] sm:$0xff] %vm384, %v1431
    %1565 = vst [vmem:[#allocation6 + $0x310] sm:$0xff] %v1433
    %1566 = vst.msk [vmem:[#allocation6 + $0x318] sm:$0xff] %vm384, %v1435
    %1567 = vst [vmem:[#allocation6 + $0x320] sm:$0xff] %v1439
    %1568 = vst.msk [vmem:[#allocation6 + $0x328] sm:$0xff] %vm384, %v1441
    %1569 = vst [vmem:[#allocation6 + $0x330] sm:$0xff] %v1443
    %1570 = vst.msk [vmem:[#allocation6 + $0x338] sm:$0xff] %vm384, %v1445
    %1571 = vst [vmem:[#allocation6 + $0x340] sm:$0xff] %v1449
    %1572 = vst.msk [vmem:[#allocation6 + $0x348] sm:$0xff] %vm384, %v1451
    %1573 = vst [vmem:[#allocation6 + $0x350] sm:$0xff] %v1453
    %1574 = vst.msk [vmem:[#allocation6 + $0x358] sm:$0xff] %vm384, %v1455
    %1575 = vst [vmem:[#allocation6 + $0x360] sm:$0xff] %v1459
    %1576 = vst.msk [vmem:[#allocation6 + $0x368] sm:$0xff] %vm384, %v1461
    %1577 = vst [vmem:[#allocation6 + $0x370] sm:$0xff] %v1463
    %1578 = vst.msk [vmem:[#allocation6 + $0x378] sm:$0xff] %vm384, %v1465
    // Predicated region
    $region26: #{mlp2.1} parent=1 // pred_check
      _
    $region27: #{mlp2.1} parent=1 // pred_check_branch
      %1580 = sbr.rel (0) target = $region29
    $region28: #{mlp2.1} parent=1 // pred_region
      %s1582 = ssub.s32 14336, 14336
      %1583 = vsyncadd [#allocation5], %s1582
      %s1584 = sshll.u32 [#allocation6], 4
      %s1585 = int_to_ptr.vmem [resolvable:$true] %s1584
      %1590 = dma.vmem_to_hbm [thread:$0]  %s1585, 14336, %s5, [#allocation5], 256, 256, 16
    $region29: #{mlp2.1} parent=1 // pred_fallthru
      _
    // Predicated region
    $region30: #{mlp2.1} parent=1 // pred_check
      _
    $region31: #{mlp2.1} parent=1 // pred_check_branch
      %1592 = sbr.rel (0) target = $region33
    $region32: #{mlp2.1} parent=1 // pred_region
      %1593 = dma.done [#allocation5], 14336
    $region33: #{mlp2.1} parent=1 // pred_fallthru
      _
    %1594 = vsyncpa [#allocation4], 1
    %1595 = vsyncpa [#allocation5], 1

</llo_original>
